<compile_context>
chip_gen: v5e
topology: v5e:2x2
jax: 0.10.0
libtpu: 0.0.40
codegen_flags: <defaults>
</compile_context>

<pallas_src>
import jax
import jax.numpy as jnp
from jax import lax
from jax.experimental import pallas as pl
from jax.experimental.pallas import tpu as pltpu

# ---------------- configuration (small shapes) ----------------
B = 2                         # batch (whole batch processed in one grid step)
IN_CHANNELS = (4, 8)          # per conv layer
OUT_CHANNELS = (8, 16)        # per conv layer
K = 3                         # kernel_sizes = [3, 3], padding = [1, 1], stride = 1
POOL = 4                      # maxpool kernel/stride
L0 = 16                       # input length: 16 -> pool4 -> 4 -> pool4 -> 1
ZDIM = 8                      # latent dim
_INV_SQRT2 = 0.7071067811865476

# ---------------- packed parameter slab layout ----------------
# Every weight/bias lives in ONE [PROWS, PCOLS] f32 slab (single DMA); the kernel
# reads each block through a static ref window. All row offsets are padded to a
# multiple of 8 (sublane tile) so the windows are free aligned views.
PCOLS = 16
_PACK_LAYOUT = (
    ("wc0",   K * IN_CHANNELS[0],  OUT_CHANNELS[0]),   # Conv1d(4->8),  taps fused [12, 8]
    ("wc1",   K * IN_CHANNELS[1],  OUT_CHANNELS[1]),   # Conv1d(8->16), taps fused [24,16]
    ("wd1",   OUT_CHANNELS[1],     ZDIM),              # dense1 (16->8)            [16, 8]
    ("wmulv", ZDIM,                2 * ZDIM),          # mu & log_var fused        [ 8,16]
    ("wd2",   ZDIM,                OUT_CHANNELS[1]),   # dense2 (8->16)            [ 8,16]
    ("wt0",   K * OUT_CHANNELS[1], IN_CHANNELS[1]),    # ConvT(16->8) as conv      [48, 8]
    ("wt1",   K * OUT_CHANNELS[0], IN_CHANNELS[0]),    # ConvT(8->4)  as conv      [24, 4]
    ("bc0",   1, OUT_CHANNELS[0]),
    ("bc1",   1, OUT_CHANNELS[1]),
    ("bd1",   1, ZDIM),
    ("bmulv", 1, 2 * ZDIM),
    ("bd2",   1, OUT_CHANNELS[1]),
    ("bt0",   1, IN_CHANNELS[1]),
    ("bt1",   1, IN_CHANNELS[0]),
)
_POFF = {}
_off = 0
for _name, _r, _c in _PACK_LAYOUT:
    _POFF[_name] = (_off, _r, _c)
    _off += ((_r + 7) // 8) * 8        # 8-row (sublane-tile) aligned offsets
PROWS = _off                           # 200


# ---------------- math helpers (pure jnp; usable inside the kernel) -------------
def _gelu(x):
    # torch.nn.GELU default ('none' approximation): 0.5*x*(1+erf(x/sqrt(2)))
    return 0.5 * x * (1.0 + lax.erf(x * _INV_SQRT2))


def _softplus(x):
    # F.softplus default (beta=1, threshold=20)
    return jnp.where(x > 20.0, x, jnp.log(1.0 + jnp.exp(jnp.minimum(x, 20.0))))


def _pget(p_ref, name):
    """Static, 8-row-aligned window load of one packed parameter block."""
    off, r, c = _POFF[name]
    return p_ref[off:off + r, 0:c]


def _conv1d_same(x, w_flat, b_row, seg_len):
    """'same' Conv1d (K=3, stride=1, dilation=1, pad=1), batched over samples.

    x: [B*seg_len, Cin] with samples stacked along rows (sample-major);
    w_flat: [K*Cin, Cout] (tap-major rows); b_row: [1, Cout] -> [B*seg_len, Cout].
    The halo is built with XLU sublane rolls + masking of per-sample edge rows,
    then all K taps are fused into a single matmul (im2col along lanes).
    """
    rows = x.shape[0]
    idx = lax.broadcasted_iota(jnp.int32, x.shape, 0)
    if seg_len & (seg_len - 1) == 0:
        pos = idx & (seg_len - 1)          # position within a sample (power-of-2 length)
    else:
        pos = idx % seg_len
    x_prev = jnp.where(pos == 0, 0.0, pltpu.roll(x, shift=1, axis=0))
    x_next = jnp.where(pos == seg_len - 1, 0.0, pltpu.roll(x, shift=rows - 1, axis=0))
    xs = jnp.concatenate([x_prev, x, x_next], axis=1)                    # [rows, K*Cin]
    return jnp.dot(xs, w_flat, preferred_element_type=jnp.float32) + b_row


def _maxpool_with_mask(x, pool):
    """MaxPool1d(pool) with argmax mask (== return_indices), vectorized.

    x: [R, C] (samples stacked on rows; R % pool == 0 and pool windows never
    cross sample boundaries) -> (pooled [R//pool, C], mask [R, C]); the mask is
    1.0 at the FIRST maximal element of each window (first-occurrence tie-break).
    """
    R, C = x.shape
    xw = x.reshape(R // pool, pool, C)
    wmax = jnp.max(xw, axis=1, keepdims=True)                            # [R/p, 1, C]
    pidx = lax.broadcasted_iota(jnp.int32, xw.shape, 1)                  # window position
    first = jnp.min(jnp.where(xw == wmax, pidx, pool), axis=1, keepdims=True)
    mask = (pidx == first).astype(x.dtype)                               # one-hot argmax
    return wmax.reshape(R // pool, C), mask.reshape(R, C)


def _maxunpool(v, mask, pool):
    """MaxUnpool1d(pool): scatter v back to recorded argmax positions (vectorized).

    v: [Rp, C], mask: [Rp*pool, C] -> [Rp*pool, C]
    """
    Rp, C = v.shape
    out = mask.reshape(Rp, pool, C) * v[:, None, :]
    return out.reshape(Rp * pool, C)


# ---------------- Pallas kernel (whole batch in one grid step) ----------------
def vae_kernel(x_ref, eps_ref, p_ref, rec_ref, kl_ref):
    x = x_ref[...]                     # [B*L0, Cin0] = [32, 4], channels-last, sample-major rows
    eps = eps_ref[...]                 # [B, ZDIM]

    # ---------------- encoder (all layers batched over samples) ----------------
    h = _gelu(_conv1d_same(x, _pget(p_ref, "wc0"), _pget(p_ref, "bc0"), L0))            # [B*16, 8]
    h, mask0 = _maxpool_with_mask(h, POOL)                                               # [B*4,8]/[B*16,8]
    h = _gelu(_conv1d_same(h, _pget(p_ref, "wc1"), _pget(p_ref, "bc1"), L0 // POOL))    # [B*4, 16]
    h, mask1 = _maxpool_with_mask(h, POOL)                                               # [B,16]/[B*4,16]
    hz = _gelu(jnp.dot(h, _pget(p_ref, "wd1"),
                       preferred_element_type=jnp.float32) + _pget(p_ref, "bd1"))        # [B, 8]

    # ---------------- GaussianSample (mu / log_var fused into one matmul) -------
    mulv = jnp.dot(hz, _pget(p_ref, "wmulv"),
                   preferred_element_type=jnp.float32) + _pget(p_ref, "bmulv")           # [B, 16]
    mu = mulv[:, 0:ZDIM]
    log_var = _softplus(mulv[:, ZDIM:2 * ZDIM])
    z = mu + jnp.exp(0.5 * log_var) * eps                                                # [B, 8]

    # ---------------- KL = log q(z|mu,lv) - log p(z)  (no flow; constants cancel) ---
    kl = jnp.sum(-0.5 * log_var - (z - mu) ** 2 / (2.0 * jnp.exp(log_var))
                 + 0.5 * z * z, axis=-1, keepdims=True)                                   # [B, 1]

    # ---------------- decoder ----------------
    d = _gelu(jnp.dot(z, _pget(p_ref, "wd2"),
                      preferred_element_type=jnp.float32) + _pget(p_ref, "bd2"))         # [B, 16]
    d = _maxunpool(d, mask1, POOL)                                                        # [B*4, 16]
    d = _gelu(_conv1d_same(d, _pget(p_ref, "wt0"), _pget(p_ref, "bt0"), L0 // POOL))     # [B*4, 8]
    d = _maxunpool(d, mask0, POOL)                                                        # [B*16, 8]
    rec = _conv1d_same(d, _pget(p_ref, "wt1"), _pget(p_ref, "bt1"), L0)                  # [B*16, 4]

    # direct full-block stores (no in-kernel concat / zero-pad packing)
    rec_ref[...] = rec
    kl_ref[...] = kl


# ---------------- wrapper ----------------
def autoencoder_forward(x_ncl, eps, pslab):
    """x_ncl: [B, Cin, L0] (PyTorch NCL). Returns (rec [B, Cin, L0], kl [B])."""
    bsz = x_ncl.shape[0]
    # channels-last, samples stacked along rows: [B*L0, Cin]
    x_rows = jnp.transpose(x_ncl, (0, 2, 1)).reshape(bsz * L0, IN_CHANNELS[0])
    rec_rows, kl2 = pl.pallas_call(
        vae_kernel,
        out_shape=(jax.ShapeDtypeStruct((bsz * L0, IN_CHANNELS[0]), jnp.float32),
                   jax.ShapeDtypeStruct((bsz, 1), jnp.float32)),
        grid=(1,),                                           # whole batch in ONE step
        in_specs=[
            pl.BlockSpec((bsz * L0, IN_CHANNELS[0]), lambda b: (0, 0)),   # stacked samples
            pl.BlockSpec((bsz, ZDIM), lambda b: (0, 0)),                  # eps rows
            pl.BlockSpec((PROWS, PCOLS), lambda b: (0, 0)),               # whole param slab
        ],
        out_specs=(pl.BlockSpec((bsz * L0, IN_CHANNELS[0]), lambda b: (0, 0)),
                   pl.BlockSpec((bsz, 1), lambda b: (0, 0))),
        compiler_params=pltpu.CompilerParams(
            dimension_semantics=("arbitrary",)),
    )(x_rows, eps, pslab)
    rec = jnp.transpose(rec_rows.reshape(bsz, L0, IN_CHANNELS[0]), (0, 2, 1))
    return rec, kl2[:, 0]


# ---------------- parameter construction / packing ----------------
def init_torch_params(key):
    """Deterministic PyTorch-layout parameters (Conv1d [O,C,K], ConvT1d [I,O,K], Linear [out,in])."""
    ks = jax.random.split(key, 16)

    def u(k, shape, fan_in):
        bnd = 1.0 / float(fan_in) ** 0.5
        return jax.random.uniform(k, shape, jnp.float32, -bnd, bnd)

    p = {}
    p["Wc0"] = u(ks[0], (OUT_CHANNELS[0], IN_CHANNELS[0], K), IN_CHANNELS[0] * K)
    p["bc0v"] = u(ks[1], (OUT_CHANNELS[0],), IN_CHANNELS[0] * K)
    p["Wc1"] = u(ks[2], (OUT_CHANNELS[1], IN_CHANNELS[1], K), IN_CHANNELS[1] * K)
    p["bc1v"] = u(ks[3], (OUT_CHANNELS[1],), IN_CHANNELS[1] * K)
    p["Wd1"] = u(ks[4], (ZDIM, OUT_CHANNELS[1]), OUT_CHANNELS[1])
    p["bd1v"] = u(ks[5], (ZDIM,), OUT_CHANNELS[1])
    p["Wmu"] = u(ks[6], (ZDIM, ZDIM), ZDIM)
    p["bmuv"] = u(ks[7], (ZDIM,), ZDIM)
    p["Wlv"] = u(ks[8], (ZDIM, ZDIM), ZDIM)
    p["blvv"] = u(ks[9], (ZDIM,), ZDIM)
    p["Wd2"] = u(ks[10], (OUT_CHANNELS[1], ZDIM), ZDIM)
    p["bd2v"] = u(ks[11], (OUT_CHANNELS[1],), ZDIM)
    # ConvTranspose1d weight [in, out, K]
    p["Wt0"] = u(ks[12], (OUT_CHANNELS[1], IN_CHANNELS[1], K), IN_CHANNELS[1] * K)
    p["bt0v"] = u(ks[13], (IN_CHANNELS[1],), IN_CHANNELS[1] * K)
    p["Wt1"] = u(ks[14], (OUT_CHANNELS[0], IN_CHANNELS[0], K), IN_CHANNELS[0] * K)
    p["bt1v"] = u(ks[15], (IN_CHANNELS[0],), IN_CHANNELS[0] * K)
    return p


def to_kernel_params(pt):
    """PyTorch-layout params -> fused, matmul-ready kernel blocks."""
    kp = {}
    # Conv1d [O,C,K] -> tap-major [K*Cin, Cout]
    kp["wc0"] = jnp.transpose(pt["Wc0"], (2, 1, 0)).reshape(K * IN_CHANNELS[0], OUT_CHANNELS[0])
    kp["wc1"] = jnp.transpose(pt["Wc1"], (2, 1, 0)).reshape(K * IN_CHANNELS[1], OUT_CHANNELS[1])
    # Linear [out,in] -> [in,out]; mu/log_var fused along the output axis
    kp["wd1"] = pt["Wd1"].T
    kp["wmulv"] = jnp.concatenate([pt["Wmu"].T, pt["Wlv"].T], axis=1)
    kp["wd2"] = pt["Wd2"].T
    # ConvTranspose1d (stride=1, pad=1) == Conv1d with flipped/transposed taps:
    # per-tap M[k][c,o] = W[c, o, K-1-k]  ->  tap-major [K*Cin, Cout]
    kp["wt0"] = jnp.transpose(jnp.flip(pt["Wt0"], axis=2), (2, 0, 1)).reshape(
        K * OUT_CHANNELS[1], IN_CHANNELS[1])
    kp["wt1"] = jnp.transpose(jnp.flip(pt["Wt1"], axis=2), (2, 0, 1)).reshape(
        K * OUT_CHANNELS[0], IN_CHANNELS[0])
    # biases as [1, C] rows
    kp["bc0"] = pt["bc0v"][None]
    kp["bc1"] = pt["bc1v"][None]
    kp["bd1"] = pt["bd1v"][None]
    kp["bmulv"] = jnp.concatenate([pt["bmuv"], pt["blvv"]])[None]
    kp["bd2"] = pt["bd2v"][None]
    kp["bt0"] = pt["bt0v"][None]
    kp["bt1"] = pt["bt1v"][None]
    return kp


def pack_params(kp):
    """Pack all kernel blocks into one [PROWS, PCOLS] f32 slab at 8-aligned row offsets."""
    slab = jnp.zeros((PROWS, PCOLS), jnp.float32)
    for name, r, c in _PACK_LAYOUT:
        blk = kp[name].astype(jnp.float32)
        assert blk.shape == (r, c), (name, blk.shape, (r, c))
        off = _POFF[name][0]
        slab = slab.at[off:off + r, 0:c].set(blk)
    return slab


# ---------------- independent pure-JAX reference (channels-first, lax convs) -----
def _ref_conv1d(x, W, b):      # x [B,C,L], W [O,C,K] (PyTorch layout), padding=1
    y = lax.conv_general_dilated(x, W, window_strides=(1,), padding=((1, 1),),
                                 dimension_numbers=("NCH", "OIH", "NCH"))
    return y + b[None, :, None]


def _ref_convT1d(x, W, b):     # PyTorch ConvTranspose1d (stride=1, pad=1), W [I,O,K]
    Wc = jnp.transpose(jnp.flip(W, axis=2), (1, 0, 2))   # equivalent Conv1d weight [O,I,K]
    return _ref_conv1d(x, Wc, b)


def _ref_maxpool(x, pool):     # x [B,C,L]; first-occurrence argmax tie-break
    bsz, C, L = x.shape
    xw = x.reshape(bsz, C, L // pool, pool)
    return jnp.max(xw, axis=-1), jnp.argmax(xw, axis=-1)


def _ref_maxunpool(v, idx, pool):   # v/idx: [B,C,Lp]
    bsz, C, Lp = v.shape
    onehot = (idx[..., None] == jnp.arange(pool)).astype(v.dtype)   # [B,C,Lp,pool]
    return (v[..., None] * onehot).reshape(bsz, C, Lp * pool)


def reference_forward(x, eps, pt):
    h = _gelu(_ref_conv1d(x, pt["Wc0"], pt["bc0v"]))
    h, i0 = _ref_maxpool(h, POOL)
    h = _gelu(_ref_conv1d(h, pt["Wc1"], pt["bc1v"]))
    h, i1 = _ref_maxpool(h, POOL)
    hz = _gelu(h[:, :, 0] @ pt["Wd1"].T + pt["bd1v"])
    mu = hz @ pt["Wmu"].T + pt["bmuv"]
    log_var = _softplus(hz @ pt["Wlv"].T + pt["blvv"])
    z = mu + jnp.exp(0.5 * log_var) * eps
    kl = jnp.sum(-0.5 * log_var - (z - mu) ** 2 / (2.0 * jnp.exp(log_var))
                 + 0.5 * z * z, axis=-1)
    d = _gelu(z @ pt["Wd2"].T + pt["bd2v"])[:, :, None]
    d = _ref_maxunpool(d, i1, POOL)
    d = _gelu(_ref_convT1d(d, pt["Wt0"], pt["bt0v"]))
    d = _ref_maxunpool(d, i0, POOL)
    rec = _ref_convT1d(d, pt["Wt1"], pt["bt1v"])
    return rec, kl


if __name__ == "__main__":
    key = jax.random.PRNGKey(0)
    kx, keps, kp = jax.random.split(key, 3)
    x = jax.random.normal(kx, (B, IN_CHANNELS[0], L0), jnp.float32)   # PyTorch NCL input
    eps = jax.random.normal(keps, (B, ZDIM), jnp.float32)             # reparameterization noise
    pt = init_torch_params(kp)
    pslab = pack_params(to_kernel_params(pt))

    rec, kl = jax.jit(autoencoder_forward)(x, eps, pslab)
    jax.block_until_ready((rec, kl))

    # sanity: independent channels-first reference using lax convolutions
    rec_ref, kl_ref = reference_forward(x, eps, pt)

    assert rec.shape == (B, IN_CHANNELS[0], L0), rec.shape
    assert kl.shape == (B,), kl.shape
    assert bool(jnp.allclose(rec, rec_ref, atol=1e-2, rtol=1e-2)), \
        float(jnp.max(jnp.abs(rec - rec_ref)))
    assert bool(jnp.allclose(kl, kl_ref, atol=1e-2, rtol=1e-2)), \
        float(jnp.max(jnp.abs(kl - kl_ref)))
    print("KERNEL_OK")
</pallas_src>

<mosaic_0001>
module attributes {stable_mosaic.version = 11 : i64} {
  func.func @vae_kernel(%arg0: i32, %arg1: memref<32x4xf32, #tpu.memory_space<vmem>>, %arg2: memref<2x8xf32, #tpu.memory_space<vmem>>, %arg3: memref<200x16xf32, #tpu.memory_space<vmem>>, %arg4: memref<32x4xf32, #tpu.memory_space<vmem>>, %arg5: memref<2x1xf32, #tpu.memory_space<vmem>>) attributes {dimension_semantics = [#tpu.dimension_semantics<arbitrary>], iteration_bounds = array<i64: 1>, scalar_prefetch = 0 : i64, scratch_operands = 0 : i64, tpu.core_type = #tpu.core_type<tc>, window_params = [{pipeline_mode = #tpu.pipeline_mode<synchronous>, transform_indices = @transform_0, window_bounds = array<i64: 32, 4>}, {pipeline_mode = #tpu.pipeline_mode<synchronous>, transform_indices = @transform_1, window_bounds = array<i64: 2, 8>}, {pipeline_mode = #tpu.pipeline_mode<synchronous>, transform_indices = @transform_2, window_bounds = array<i64: 200, 16>}, {pipeline_mode = #tpu.pipeline_mode<synchronous>, transform_indices = @transform_3, window_bounds = array<i64: 32, 4>}, {pipeline_mode = #tpu.pipeline_mode<synchronous>, transform_indices = @transform_4, window_bounds = array<i64: 2, 1>}]} {
    %c0 = arith.constant 0 : index
    %c0_0 = arith.constant 0 : index
    %0 = vector.load %arg1[%c0, %c0_0] : memref<32x4xf32, #tpu.memory_space<vmem>>, vector<32x4xf32>
    %c0_1 = arith.constant 0 : index
    %c0_2 = arith.constant 0 : index
    %1 = vector.load %arg2[%c0_1, %c0_2] : memref<2x8xf32, #tpu.memory_space<vmem>>, vector<2x8xf32>
    %c0_3 = arith.constant 0 : index
    %c0_4 = arith.constant 0 : index
    %2 = vector.load %arg3[%c0_3, %c0_4] : memref<200x16xf32, #tpu.memory_space<vmem>>, vector<12x8xf32>
    %c144 = arith.constant 144 : index
    %c0_5 = arith.constant 0 : index
    %3 = vector.load %arg3[%c144, %c0_5] : memref<200x16xf32, #tpu.memory_space<vmem>>, vector<1x8xf32>
    %4 = tpu.iota {dimensions = array<i32: 0>} : vector<32x4xi32>
    %c15_i32 = arith.constant 15 : i32
    %5 = vector.broadcast %c15_i32 : i32 to vector<32x4xi32>
    %6 = arith.andi %4, %5 : vector<32x4xi32>
    %c0_i32 = arith.constant 0 : i32
    %7 = vector.broadcast %c0_i32 : i32 to vector<32x4xi32>
    %8 = arith.cmpi eq, %6, %7 : vector<32x4xi32>
    %c1_i32 = arith.constant 1 : i32
    %9 = tpu.dynamic_rotate %0 by %c1_i32 dim 0 : vector<32x4xf32>, i32 -> vector<32x4xf32>
    %cst = arith.constant 0.000000e+00 : f32
    %10 = vector.broadcast %cst : f32 to vector<32x4xf32>
    %11 = arith.select %8, %10, %9 : vector<32x4xi1>, vector<32x4xf32>
    %c15_i32_6 = arith.constant 15 : i32
    %12 = vector.broadcast %c15_i32_6 : i32 to vector<32x4xi32>
    %13 = arith.cmpi eq, %6, %12 : vector<32x4xi32>
    %c31_i32 = arith.constant 31 : i32
    %14 = tpu.dynamic_rotate %0 by %c31_i32 dim 0 : vector<32x4xf32>, i32 -> vector<32x4xf32>
    %cst_7 = arith.constant 0.000000e+00 : f32
    %15 = vector.broadcast %cst_7 : f32 to vector<32x4xf32>
    %16 = arith.select %13, %15, %14 : vector<32x4xi1>, vector<32x4xf32>
    %17 = tpu.concatenate %11, %0, %16 in 1 : vector<32x4xf32>, vector<32x4xf32>, vector<32x4xf32> -> vector<32x12xf32>
    %cst_8 = arith.constant dense<0.000000e+00> : vector<32x8xf32>
    %18 = tpu.matmul %17, %2, %cst_8 {dimension_numbers = #tpu.dot_dimension_numbers<[1], [0], [0], [1], [0, 0, 1, 1], [], []>} : vector<32x12xf32>, vector<12x8xf32>, vector<32x8xf32> -> vector<32x8xf32>
    %19 = vector.broadcast %3 : vector<1x8xf32> to vector<32x8xf32>
    %20 = arith.addf %18, %19 : vector<32x8xf32>
    %cst_9 = arith.constant 5.000000e-01 : f32
    %21 = vector.broadcast %cst_9 : f32 to vector<32x8xf32>
    %22 = arith.mulf %21, %20 : vector<32x8xf32>
    %cst_10 = arith.constant 0.707106769 : f32
    %23 = vector.broadcast %cst_10 : f32 to vector<32x8xf32>
    %24 = arith.mulf %20, %23 : vector<32x8xf32>
    %25 = math.erf %24 : vector<32x8xf32>
    %cst_11 = arith.constant 1.000000e+00 : f32
    %26 = vector.broadcast %cst_11 : f32 to vector<32x8xf32>
    %27 = arith.addf %26, %25 : vector<32x8xf32>
    %28 = arith.mulf %22, %27 : vector<32x8xf32>
    %29 = vector.shape_cast %28 : vector<32x8xf32> to vector<8x4x8xf32>
    %cst_12 = arith.constant dense<0xFF800000> : vector<8x8xf32>
    %30 = vector.multi_reduction <maximumf>, %29, %cst_12 [1] : vector<8x4x8xf32> to vector<8x8xf32>
    %31 = vector.shape_cast %30 : vector<8x8xf32> to vector<8x1x8xf32>
    %32 = tpu.iota {dimensions = array<i32: 1>} : vector<8x4x8xi32>
    %33 = vector.broadcast %31 : vector<8x1x8xf32> to vector<8x4x8xf32>
    %34 = arith.cmpf oeq, %29, %33 : vector<8x4x8xf32>
    %c4_i32 = arith.constant 4 : i32
    %35 = vector.broadcast %c4_i32 : i32 to vector<8x4x8xi32>
    %36 = arith.select %34, %32, %35 : vector<8x4x8xi1>, vector<8x4x8xi32>
    %cst_13 = arith.constant dense<2147483647> : vector<8x8xi32>
    %37 = vector.multi_reduction <minsi>, %36, %cst_13 [1] : vector<8x4x8xi32> to vector<8x8xi32>
    %38 = vector.shape_cast %37 : vector<8x8xi32> to vector<8x1x8xi32>
    %39 = vector.broadcast %38 : vector<8x1x8xi32> to vector<8x4x8xi32>
    %40 = arith.cmpi eq, %32, %39 : vector<8x4x8xi32>
    %41 = arith.extui %40 : vector<8x4x8xi1> to vector<8x4x8xi32>
    %42 = arith.sitofp %41 : vector<8x4x8xi32> to vector<8x4x8xf32>
    %43 = vector.shape_cast %31 : vector<8x1x8xf32> to vector<8x8xf32>
    %44 = vector.shape_cast %42 : vector<8x4x8xf32> to vector<32x8xf32>
    %c16 = arith.constant 16 : index
    %c0_14 = arith.constant 0 : index
    %45 = vector.load %arg3[%c16, %c0_14] : memref<200x16xf32, #tpu.memory_space<vmem>>, vector<24x16xf32>
    %c152 = arith.constant 152 : index
    %c0_15 = arith.constant 0 : index
    %46 = vector.load %arg3[%c152, %c0_15] : memref<200x16xf32, #tpu.memory_space<vmem>>, vector<1x16xf32>
    %47 = tpu.iota {dimensions = array<i32: 0>} : vector<8x8xi32>
    %c3_i32 = arith.constant 3 : i32
    %48 = vector.broadcast %c3_i32 : i32 to vector<8x8xi32>
    %49 = arith.andi %47, %48 : vector<8x8xi32>
    %c0_i32_16 = arith.constant 0 : i32
    %50 = vector.broadcast %c0_i32_16 : i32 to vector<8x8xi32>
    %51 = arith.cmpi eq, %49, %50 : vector<8x8xi32>
    %c1_i32_17 = arith.constant 1 : i32
    %52 = tpu.dynamic_rotate %43 by %c1_i32_17 dim 0 : vector<8x8xf32>, i32 -> vector<8x8xf32>
    %cst_18 = arith.constant 0.000000e+00 : f32
    %53 = vector.broadcast %cst_18 : f32 to vector<8x8xf32>
    %54 = arith.select %51, %53, %52 : vector<8x8xi1>, vector<8x8xf32>
    %c3_i32_19 = arith.constant 3 : i32
    %55 = vector.broadcast %c3_i32_19 : i32 to vector<8x8xi32>
    %56 = arith.cmpi eq, %49, %55 : vector<8x8xi32>
    %c7_i32 = arith.constant 7 : i32
    %57 = tpu.dynamic_rotate %43 by %c7_i32 dim 0 : vector<8x8xf32>, i32 -> vector<8x8xf32>
    %cst_20 = arith.constant 0.000000e+00 : f32
    %58 = vector.broadcast %cst_20 : f32 to vector<8x8xf32>
    %59 = arith.select %56, %58, %57 : vector<8x8xi1>, vector<8x8xf32>
    %60 = tpu.concatenate %54, %43, %59 in 1 : vector<8x8xf32>, vector<8x8xf32>, vector<8x8xf32> -> vector<8x24xf32>
    %cst_21 = arith.constant dense<0.000000e+00> : vector<8x16xf32>
    %61 = tpu.matmul %60, %45, %cst_21 {dimension_numbers = #tpu.dot_dimension_numbers<[1], [0], [0], [1], [0, 0, 1, 1], [], []>} : vector<8x24xf32>, vector<24x16xf32>, vector<8x16xf32> -> vector<8x16xf32>
    %62 = vector.broadcast %46 : vector<1x16xf32> to vector<8x16xf32>
    %63 = arith.addf %61, %62 : vector<8x16xf32>
    %cst_22 = arith.constant 5.000000e-01 : f32
    %64 = vector.broadcast %cst_22 : f32 to vector<8x16xf32>
    %65 = arith.mulf %64, %63 : vector<8x16xf32>
    %cst_23 = arith.constant 0.707106769 : f32
    %66 = vector.broadcast %cst_23 : f32 to vector<8x16xf32>
    %67 = arith.mulf %63, %66 : vector<8x16xf32>
    %68 = math.erf %67 : vector<8x16xf32>
    %cst_24 = arith.constant 1.000000e+00 : f32
    %69 = vector.broadcast %cst_24 : f32 to vector<8x16xf32>
    %70 = arith.addf %69, %68 : vector<8x16xf32>
    %71 = arith.mulf %65, %70 : vector<8x16xf32>
    %72 = vector.shape_cast %71 : vector<8x16xf32> to vector<2x4x16xf32>
    %cst_25 = arith.constant dense<0xFF800000> : vector<2x16xf32>
    %73 = vector.multi_reduction <maximumf>, %72, %cst_25 [1] : vector<2x4x16xf32> to vector<2x16xf32>
    %74 = vector.shape_cast %73 : vector<2x16xf32> to vector<2x1x16xf32>
    %75 = tpu.iota {dimensions = array<i32: 1>} : vector<2x4x16xi32>
    %76 = vector.broadcast %74 : vector<2x1x16xf32> to vector<2x4x16xf32>
    %77 = arith.cmpf oeq, %72, %76 : vector<2x4x16xf32>
    %c4_i32_26 = arith.constant 4 : i32
    %78 = vector.broadcast %c4_i32_26 : i32 to vector<2x4x16xi32>
    %79 = arith.select %77, %75, %78 : vector<2x4x16xi1>, vector<2x4x16xi32>
    %cst_27 = arith.constant dense<2147483647> : vector<2x16xi32>
    %80 = vector.multi_reduction <minsi>, %79, %cst_27 [1] : vector<2x4x16xi32> to vector<2x16xi32>
    %81 = vector.shape_cast %80 : vector<2x16xi32> to vector<2x1x16xi32>
    %82 = vector.broadcast %81 : vector<2x1x16xi32> to vector<2x4x16xi32>
    %83 = arith.cmpi eq, %75, %82 : vector<2x4x16xi32>
    %84 = arith.extui %83 : vector<2x4x16xi1> to vector<2x4x16xi32>
    %85 = arith.sitofp %84 : vector<2x4x16xi32> to vector<2x4x16xf32>
    %86 = vector.shape_cast %74 : vector<2x1x16xf32> to vector<2x16xf32>
    %87 = vector.shape_cast %85 : vector<2x4x16xf32> to vector<8x16xf32>
    %c40 = arith.constant 40 : index
    %c0_28 = arith.constant 0 : index
    %88 = vector.load %arg3[%c40, %c0_28] : memref<200x16xf32, #tpu.memory_space<vmem>>, vector<16x8xf32>
    %cst_29 = arith.constant dense<0.000000e+00> : vector<2x8xf32>
    %89 = tpu.matmul %86, %88, %cst_29 {dimension_numbers = #tpu.dot_dimension_numbers<[1], [0], [0], [1], [0, 0, 1, 1], [], []>} : vector<2x16xf32>, vector<16x8xf32>, vector<2x8xf32> -> vector<2x8xf32>
    %c160 = arith.constant 160 : index
    %c0_30 = arith.constant 0 : index
    %90 = vector.load %arg3[%c160, %c0_30] : memref<200x16xf32, #tpu.memory_space<vmem>>, vector<1x8xf32>
    %91 = vector.broadcast %90 : vector<1x8xf32> to vector<2x8xf32>
    %92 = arith.addf %89, %91 : vector<2x8xf32>
    %cst_31 = arith.constant 5.000000e-01 : f32
    %93 = vector.broadcast %cst_31 : f32 to vector<2x8xf32>
    %94 = arith.mulf %93, %92 : vector<2x8xf32>
    %cst_32 = arith.constant 0.707106769 : f32
    %95 = vector.broadcast %cst_32 : f32 to vector<2x8xf32>
    %96 = arith.mulf %92, %95 : vector<2x8xf32>
    %97 = math.erf %96 : vector<2x8xf32>
    %cst_33 = arith.constant 1.000000e+00 : f32
    %98 = vector.broadcast %cst_33 : f32 to vector<2x8xf32>
    %99 = arith.addf %98, %97 : vector<2x8xf32>
    %100 = arith.mulf %94, %99 : vector<2x8xf32>
    %c56 = arith.constant 56 : index
    %c0_34 = arith.constant 0 : index
    %101 = vector.load %arg3[%c56, %c0_34] : memref<200x16xf32, #tpu.memory_space<vmem>>, vector<8x16xf32>
    %cst_35 = arith.constant dense<0.000000e+00> : vector<2x16xf32>
    %102 = tpu.matmul %100, %101, %cst_35 {dimension_numbers = #tpu.dot_dimension_numbers<[1], [0], [0], [1], [0, 0, 1, 1], [], []>} : vector<2x8xf32>, vector<8x16xf32>, vector<2x16xf32> -> vector<2x16xf32>
    %c168 = arith.constant 168 : index
    %c0_36 = arith.constant 0 : index
    %103 = vector.load %arg3[%c168, %c0_36] : memref<200x16xf32, #tpu.memory_space<vmem>>, vector<1x16xf32>
    %104 = vector.broadcast %103 : vector<1x16xf32> to vector<2x16xf32>
    %105 = arith.addf %102, %104 : vector<2x16xf32>
    %106 = vector.extract_strided_slice %105 {offsets = [0, 0], sizes = [2, 8], strides = [1, 1]} : vector<2x16xf32> to vector<2x8xf32>
    %107 = vector.extract_strided_slice %105 {offsets = [0, 8], sizes = [2, 8], strides = [1, 1]} : vector<2x16xf32> to vector<2x8xf32>
    %cst_37 = arith.constant 2.000000e+01 : f32
    %108 = vector.broadcast %cst_37 : f32 to vector<2x8xf32>
    %109 = arith.cmpf ogt, %107, %108 : vector<2x8xf32>
    %cst_38 = arith.constant 2.000000e+01 : f32
    %110 = vector.broadcast %cst_38 : f32 to vector<2x8xf32>
    %111 = arith.minimumf %107, %110 : vector<2x8xf32>
    %112 = math.exp %111 : vector<2x8xf32>
    %cst_39 = arith.constant 1.000000e+00 : f32
    %113 = vector.broadcast %cst_39 : f32 to vector<2x8xf32>
    %114 = arith.addf %113, %112 : vector<2x8xf32>
    %115 = math.log %114 : vector<2x8xf32>
    %116 = arith.select %109, %107, %115 : vector<2x8xi1>, vector<2x8xf32>
    %cst_40 = arith.constant 5.000000e-01 : f32
    %117 = vector.broadcast %cst_40 : f32 to vector<2x8xf32>
    %118 = arith.mulf %117, %116 : vector<2x8xf32>
    %119 = math.exp %118 : vector<2x8xf32>
    %120 = arith.mulf %119, %1 : vector<2x8xf32>
    %121 = arith.addf %106, %120 : vector<2x8xf32>
    %cst_41 = arith.constant -5.000000e-01 : f32
    %122 = vector.broadcast %cst_41 : f32 to vector<2x8xf32>
    %123 = arith.mulf %122, %116 : vector<2x8xf32>
    %124 = arith.subf %121, %106 : vector<2x8xf32>
    %125 = arith.mulf %124, %124 : vector<2x8xf32>
    %126 = math.exp %116 : vector<2x8xf32>
    %cst_42 = arith.constant 2.000000e+00 : f32
    %127 = vector.broadcast %cst_42 : f32 to vector<2x8xf32>
    %128 = arith.mulf %127, %126 : vector<2x8xf32>
    %129 = arith.divf %125, %128 : vector<2x8xf32>
    %130 = arith.subf %123, %129 : vector<2x8xf32>
    %cst_43 = arith.constant 5.000000e-01 : f32
    %131 = vector.broadcast %cst_43 : f32 to vector<2x8xf32>
    %132 = arith.mulf %131, %121 : vector<2x8xf32>
    %133 = arith.mulf %132, %121 : vector<2x8xf32>
    %134 = arith.addf %130, %133 : vector<2x8xf32>
    %cst_44 = arith.constant dense<0.000000e+00> : vector<2xf32>
    %135 = vector.multi_reduction <add>, %134, %cst_44 [1] : vector<2x8xf32> to vector<2xf32>
    %136 = vector.shape_cast %135 : vector<2xf32> to vector<2x1xf32>
    %c64 = arith.constant 64 : index
    %c0_45 = arith.constant 0 : index
    %137 = vector.load %arg3[%c64, %c0_45] : memref<200x16xf32, #tpu.memory_space<vmem>>, vector<8x16xf32>
    %cst_46 = arith.constant dense<0.000000e+00> : vector<2x16xf32>
    %138 = tpu.matmul %121, %137, %cst_46 {dimension_numbers = #tpu.dot_dimension_numbers<[1], [0], [0], [1], [0, 0, 1, 1], [], []>} : vector<2x8xf32>, vector<8x16xf32>, vector<2x16xf32> -> vector<2x16xf32>
    %c176 = arith.constant 176 : index
    %c0_47 = arith.constant 0 : index
    %139 = vector.load %arg3[%c176, %c0_47] : memref<200x16xf32, #tpu.memory_space<vmem>>, vector<1x16xf32>
    %140 = vector.broadcast %139 : vector<1x16xf32> to vector<2x16xf32>
    %141 = arith.addf %138, %140 : vector<2x16xf32>
    %cst_48 = arith.constant 5.000000e-01 : f32
    %142 = vector.broadcast %cst_48 : f32 to vector<2x16xf32>
    %143 = arith.mulf %142, %141 : vector<2x16xf32>
    %cst_49 = arith.constant 0.707106769 : f32
    %144 = vector.broadcast %cst_49 : f32 to vector<2x16xf32>
    %145 = arith.mulf %141, %144 : vector<2x16xf32>
    %146 = math.erf %145 : vector<2x16xf32>
    %cst_50 = arith.constant 1.000000e+00 : f32
    %147 = vector.broadcast %cst_50 : f32 to vector<2x16xf32>
    %148 = arith.addf %147, %146 : vector<2x16xf32>
    %149 = arith.mulf %143, %148 : vector<2x16xf32>
    %150 = vector.shape_cast %87 : vector<8x16xf32> to vector<2x4x16xf32>
    %151 = vector.shape_cast %149 : vector<2x16xf32> to vector<2x1x16xf32>
    %152 = vector.broadcast %151 : vector<2x1x16xf32> to vector<2x4x16xf32>
    %153 = arith.mulf %150, %152 : vector<2x4x16xf32>
    %154 = vector.shape_cast %153 : vector<2x4x16xf32> to vector<8x16xf32>
    %c72 = arith.constant 72 : index
    %c0_51 = arith.constant 0 : index
    %155 = vector.load %arg3[%c72, %c0_51] : memref<200x16xf32, #tpu.memory_space<vmem>>, vector<48x8xf32>
    %c184 = arith.constant 184 : index
    %c0_52 = arith.constant 0 : index
    %156 = vector.load %arg3[%c184, %c0_52] : memref<200x16xf32, #tpu.memory_space<vmem>>, vector<1x8xf32>
    %157 = tpu.iota {dimensions = array<i32: 0>} : vector<8x16xi32>
    %c3_i32_53 = arith.constant 3 : i32
    %158 = vector.broadcast %c3_i32_53 : i32 to vector<8x16xi32>
    %159 = arith.andi %157, %158 : vector<8x16xi32>
    %c0_i32_54 = arith.constant 0 : i32
    %160 = vector.broadcast %c0_i32_54 : i32 to vector<8x16xi32>
    %161 = arith.cmpi eq, %159, %160 : vector<8x16xi32>
    %c1_i32_55 = arith.constant 1 : i32
    %162 = tpu.dynamic_rotate %154 by %c1_i32_55 dim 0 : vector<8x16xf32>, i32 -> vector<8x16xf32>
    %cst_56 = arith.constant 0.000000e+00 : f32
    %163 = vector.broadcast %cst_56 : f32 to vector<8x16xf32>
    %164 = arith.select %161, %163, %162 : vector<8x16xi1>, vector<8x16xf32>
    %c3_i32_57 = arith.constant 3 : i32
    %165 = vector.broadcast %c3_i32_57 : i32 to vector<8x16xi32>
    %166 = arith.cmpi eq, %159, %165 : vector<8x16xi32>
    %c7_i32_58 = arith.constant 7 : i32
    %167 = tpu.dynamic_rotate %154 by %c7_i32_58 dim 0 : vector<8x16xf32>, i32 -> vector<8x16xf32>
    %cst_59 = arith.constant 0.000000e+00 : f32
    %168 = vector.broadcast %cst_59 : f32 to vector<8x16xf32>
    %169 = arith.select %166, %168, %167 : vector<8x16xi1>, vector<8x16xf32>
    %170 = tpu.concatenate %164, %154, %169 in 1 : vector<8x16xf32>, vector<8x16xf32>, vector<8x16xf32> -> vector<8x48xf32>
    %cst_60 = arith.constant dense<0.000000e+00> : vector<8x8xf32>
    %171 = tpu.matmul %170, %155, %cst_60 {dimension_numbers = #tpu.dot_dimension_numbers<[1], [0], [0], [1], [0, 0, 1, 1], [], []>} : vector<8x48xf32>, vector<48x8xf32>, vector<8x8xf32> -> vector<8x8xf32>
    %172 = vector.broadcast %156 : vector<1x8xf32> to vector<8x8xf32>
    %173 = arith.addf %171, %172 : vector<8x8xf32>
    %cst_61 = arith.constant 5.000000e-01 : f32
    %174 = vector.broadcast %cst_61 : f32 to vector<8x8xf32>
    %175 = arith.mulf %174, %173 : vector<8x8xf32>
    %cst_62 = arith.constant 0.707106769 : f32
    %176 = vector.broadcast %cst_62 : f32 to vector<8x8xf32>
    %177 = arith.mulf %173, %176 : vector<8x8xf32>
    %178 = math.erf %177 : vector<8x8xf32>
    %cst_63 = arith.constant 1.000000e+00 : f32
    %179 = vector.broadcast %cst_63 : f32 to vector<8x8xf32>
    %180 = arith.addf %179, %178 : vector<8x8xf32>
    %181 = arith.mulf %175, %180 : vector<8x8xf32>
    %182 = vector.shape_cast %44 : vector<32x8xf32> to vector<8x4x8xf32>
    %183 = vector.shape_cast %181 : vector<8x8xf32> to vector<8x1x8xf32>
    %184 = vector.broadcast %183 : vector<8x1x8xf32> to vector<8x4x8xf32>
    %185 = arith.mulf %182, %184 : vector<8x4x8xf32>
    %186 = vector.shape_cast %185 : vector<8x4x8xf32> to vector<32x8xf32>
    %c120 = arith.constant 120 : index
    %c0_64 = arith.constant 0 : index
    %187 = vector.load %arg3[%c120, %c0_64] : memref<200x16xf32, #tpu.memory_space<vmem>>, vector<24x4xf32>
    %c192 = arith.constant 192 : index
    %c0_65 = arith.constant 0 : index
    %188 = vector.load %arg3[%c192, %c0_65] : memref<200x16xf32, #tpu.memory_space<vmem>>, vector<1x4xf32>
    %189 = tpu.iota {dimensions = array<i32: 0>} : vector<32x8xi32>
    %c15_i32_66 = arith.constant 15 : i32
    %190 = vector.broadcast %c15_i32_66 : i32 to vector<32x8xi32>
    %191 = arith.andi %189, %190 : vector<32x8xi32>
    %c0_i32_67 = arith.constant 0 : i32
    %192 = vector.broadcast %c0_i32_67 : i32 to vector<32x8xi32>
    %193 = arith.cmpi eq, %191, %192 : vector<32x8xi32>
    %c1_i32_68 = arith.constant 1 : i32
    %194 = tpu.dynamic_rotate %186 by %c1_i32_68 dim 0 : vector<32x8xf32>, i32 -> vector<32x8xf32>
    %cst_69 = arith.constant 0.000000e+00 : f32
    %195 = vector.broadcast %cst_69 : f32 to vector<32x8xf32>
    %196 = arith.select %193, %195, %194 : vector<32x8xi1>, vector<32x8xf32>
    %c15_i32_70 = arith.constant 15 : i32
    %197 = vector.broadcast %c15_i32_70 : i32 to vector<32x8xi32>
    %198 = arith.cmpi eq, %191, %197 : vector<32x8xi32>
    %c31_i32_71 = arith.constant 31 : i32
    %199 = tpu.dynamic_rotate %186 by %c31_i32_71 dim 0 : vector<32x8xf32>, i32 -> vector<32x8xf32>
    %cst_72 = arith.constant 0.000000e+00 : f32
    %200 = vector.broadcast %cst_72 : f32 to vector<32x8xf32>
    %201 = arith.select %198, %200, %199 : vector<32x8xi1>, vector<32x8xf32>
    %202 = tpu.concatenate %196, %186, %201 in 1 : vector<32x8xf32>, vector<32x8xf32>, vector<32x8xf32> -> vector<32x24xf32>
    %cst_73 = arith.constant dense<0.000000e+00> : vector<32x4xf32>
    %203 = tpu.matmul %202, %187, %cst_73 {dimension_numbers = #tpu.dot_dimension_numbers<[1], [0], [0], [1], [0, 0, 1, 1], [], []>} : vector<32x24xf32>, vector<24x4xf32>, vector<32x4xf32> -> vector<32x4xf32>
    %204 = vector.broadcast %188 : vector<1x4xf32> to vector<32x4xf32>
    %205 = arith.addf %203, %204 : vector<32x4xf32>
    %c0_74 = arith.constant 0 : index
    %c0_75 = arith.constant 0 : index
    %206 = vector.load %arg4[%c0_74, %c0_75] : memref<32x4xf32, #tpu.memory_space<vmem>>, vector<32x4xf32>
    tpu.vector_store %arg4[%c0_74, %c0_75], %205 {strides = array<i32>} : memref<32x4xf32, #tpu.memory_space<vmem>>, vector<32x4xf32>,
    %c0_76 = arith.constant 0 : index
    %c0_77 = arith.constant 0 : index
    %207 = vector.load %arg5[%c0_76, %c0_77] : memref<2x1xf32, #tpu.memory_space<vmem>>, vector<2x1xf32>
    tpu.vector_store %arg5[%c0_76, %c0_77], %136 {strides = array<i32>} : memref<2x1xf32, #tpu.memory_space<vmem>>, vector<2x1xf32>,
    return
  }
  func.func @transform_0(%arg0: i32) -> (i32, i32) {
    %c0_i32 = arith.constant 0 : i32
    %c0_i32_0 = arith.constant 0 : i32
    %c0_i32_1 = arith.constant 0 : i32
    return %c0_i32, %c0_i32_0 : i32, i32
  }
  func.func @transform_1(%arg0: i32) -> (i32, i32) {
    %c0_i32 = arith.constant 0 : i32
    %c0_i32_0 = arith.constant 0 : i32
    %c0_i32_1 = arith.constant 0 : i32
    return %c0_i32, %c0_i32_0 : i32, i32
  }
  func.func @transform_2(%arg0: i32) -> (i32, i32) {
    %c0_i32 = arith.constant 0 : i32
    %c0_i32_0 = arith.constant 0 : i32
    %c0_i32_1 = arith.constant 0 : i32
    return %c0_i32, %c0_i32_0 : i32, i32
  }
  func.func @transform_3(%arg0: i32) -> (i32, i32) {
    %c0_i32 = arith.constant 0 : i32
    %c0_i32_0 = arith.constant 0 : i32
    %c0_i32_1 = arith.constant 0 : i32
    return %c0_i32, %c0_i32_0 : i32, i32
  }
  func.func @transform_4(%arg0: i32) -> (i32, i32) {
    %c0_i32 = arith.constant 0 : i32
    %c0_i32_0 = arith.constant 0 : i32
    %c0_i32_1 = arith.constant 0 : i32
    return %c0_i32, %c0_i32_0 : i32, i32
  }
}

</mosaic_0001>

<llo_original>
// kernel: autoencoder_forward.1
$region0: #{autoencoder_forward.1}
  #allocation0 [shape = 'u32[]', space=smem, size = 0x4, offset = 0x4, fixed_abs, tag = 'smem constant byte address 0x4 - core index']
  #allocation1 [shape = 'u32[72,128]{1,0:T(1,128)}', space=vmem, size = 0x9000, scoped, tag = 'internal scratch']
  %s0 = inlined_call_operand.vmem [shape: f32[32,4], index: 0, kind: input, shape index: {}]
  %s1 = inlined_call_operand.vmem [shape: f32[2,8], index: 1, kind: input, shape index: {}]
  %s2 = inlined_call_operand.vmem [shape: f32[200,16], index: 2, kind: input, shape index: {}]
  %s3 = inlined_call_operand.vmem [shape: f32[32,4], index: 3, kind: output, shape index: {0}]
  %s4 = inlined_call_operand.vmem [shape: f32[2,1], index: 4, kind: output, shape index: {1}]
  %5 = xla_tuple %s3, %s4
  %s6 = sld [smem:[#allocation0]]
  $region30: #{autoencoder_forward.1} parent=0
    _
  %s8 = ssub.s32 1, %s6
  %s9 = scalar_select 0, %s8, %s6
  // Predicated region
  $region2: #{autoencoder_forward.1} parent=0 // pred_check
    _
  $region3: #{autoencoder_forward.1} parent=0 // pred_check_branch
    %11 = sbr.rel (0) target = $region5
  $region4: #{autoencoder_forward.1} parent=0 // pred_region
    _
  $region5: #{autoencoder_forward.1} parent=0 // pred_fallthru
    _
  // Predicated region
  $region6: #{autoencoder_forward.1} parent=0 // pred_check
    _
  $region7: #{autoencoder_forward.1} parent=0 // pred_check_branch
    %13 = sbr.rel (0) target = $region9
  $region8: #{autoencoder_forward.1} parent=0 // pred_region
    _
  $region9: #{autoencoder_forward.1} parent=0 // pred_fallthru
    _
  // Predicated region
  $region10: #{autoencoder_forward.1} parent=0 // pred_check
    _
  $region11: #{autoencoder_forward.1} parent=0 // pred_check_branch
    %15 = sbr.rel (0) target = $region13
  $region12: #{autoencoder_forward.1} parent=0 // pred_region
    _
  $region13: #{autoencoder_forward.1} parent=0 // pred_fallthru
    _
  %v16 = vld [vmem:[%s0] sm:$0xff]
  %v17 = vld [vmem:[%s0 + $0x8] sm:$0xff]
  %v18 = vld [vmem:[%s0 + $0x10] sm:$0xff]
  %v19 = vld [vmem:[%s0 + $0x18] sm:$0xff]
  %v20 = vld [vmem:[%s1] sm:$0x3]
  %v21 = vld [vmem:[%s2] sm:$0xff]
  %v22 = vld [vmem:[%s2 + $0x8] sm:$0xf]
  %v23 = vld [vmem:[%s2 + $0x90] sm:$0x1]
  %v24 = vlaneseq
  %v25 = vshrl.u32 %v24, 7
  %v26 = vadd.s32 %v25, 8
  %v27 = vadd.s32 %v25, 16
  %v28 = vadd.s32 %v25, 24
  %v29 = vand.u32 %v25, 15
  %v30 = vand.u32 %v26, 15
  %v31 = vand.u32 %v27, 15
  %v32 = vand.u32 %v28, 15
  %vm33 = vcmp.eq.s32.totalorder %v29, 0
  %vm34 = vcmp.eq.s32.totalorder %v30, 0
  %vm35 = vcmp.eq.s32.totalorder %v31, 0
  %vm36 = vcmp.eq.s32.totalorder %v32, 0
  %v37 = vrot.slane %v16, 7
  %v38 = vrot.slane %v17, 7
  %v39 = vrot.slane %v18, 7
  %v40 = vrot.slane %v19, 7
  %vm41 = vcmp.lt.s32.totalorder %v25, 1
  %v42 = vsel %vm41, %v39, %v40
  %v43 = vsel %vm41, %v38, %v39
  %v44 = vsel %vm41, %v37, %v38
  %v45 = vsel %vm41, %v40, %v37
  %v46 = vsel %vm33, 0.0, %v45
  %v47 = vsel %vm34, 0.0, %v44
  %v48 = vsel %vm35, 0.0, %v43
  %v49 = vsel %vm36, 0.0, %v42
  %vm50 = vcmp.eq.s32.totalorder %v29, 15
  %vm51 = vcmp.eq.s32.totalorder %v30, 15
  %vm52 = vcmp.eq.s32.totalorder %v31, 15
  %vm53 = vcmp.eq.s32.totalorder %v32, 15
  %v54 = vrot.slane %v16, 1
  %v55 = vrot.slane %v17, 1
  %v56 = vrot.slane %v18, 1
  %v57 = vrot.slane %v19, 1
  %vm58 = vcmp.lt.s32.totalorder %v25, 7
  %v59 = vsel %vm58, %v56, %v57
  %v60 = vsel %vm58, %v55, %v56
  %v61 = vsel %vm58, %v54, %v55
  %v62 = vsel %vm58, %v57, %v54
  %v63 = vsel %vm50, 0.0, %v61
  %v64 = vsel %vm51, 0.0, %v60
  %v65 = vsel %vm52, 0.0, %v59
  %v66 = vsel %vm53, 0.0, %v62
  %71 = vrot.lane.b32.xlu0 %v16, 4
  %v72 = vpop.permute.xlu0 %71
  %73 = vrot.lane.b32.xlu0 %v17, 4
  %v74 = vpop.permute.xlu0 %73
  %75 = vrot.lane.b32.xlu0 %v18, 4
  %v76 = vpop.permute.xlu0 %75
  %77 = vrot.lane.b32.xlu0 %v19, 4
  %v78 = vpop.permute.xlu0 %77
  %87 = vrot.lane.b32.xlu0 %v63, 8
  %v88 = vpop.permute.xlu0 %87
  %89 = vrot.lane.b32.xlu0 %v64, 8
  %v90 = vpop.permute.xlu0 %89
  %91 = vrot.lane.b32.xlu0 %v65, 8
  %v92 = vpop.permute.xlu0 %91
  %93 = vrot.lane.b32.xlu0 %v66, 8
  %v94 = vpop.permute.xlu0 %93
  %vm99 = vcmask 31744
  %v100 = vsel %vm99, %v46, %v72
  %v101 = vsel %vm99, %v47, %v74
  %v102 = vsel %vm99, %v48, %v76
  %v103 = vsel %vm99, %v49, %v78
  %vm104 = vcmask 64512
  %v105 = vsel %vm104, %v100, %v88
  %v106 = vsel %vm104, %v101, %v90
  %v107 = vsel %vm104, %v102, %v92
  %v108 = vsel %vm104, %v103, %v94
  %v109 = vperm.slane %v23, 0
  %vm110 = vcmask 97280
  %v112 = vsel %vm110, %v105, 0
  %v115 = vsel %vm110, %v106, 0
  %v118 = vsel %vm110, %v107, 0
  %v121 = vsel %vm110, %v108, 0
  %vm123 = vcmask 1043456
  %v125 = vsel %vm123, %v22, 0
  %127 = vmatpush.msra.mxu0 0.0
  %128 = vmatpush.msra.mxu0 0.0
  %129 = vmatpush.msra.mxu0 0.0
  %130 = vmatpush.msra.mxu0 0.0
  %131 = vmatpush.msra.mxu0 0.0
  %132 = vmatpush.msra.mxu0 0.0
  %133 = vmatpush.msra.mxu0 0.0
  %134 = vmatpush.msra.mxu0 0.0
  %135 = vmatpush.msra.mxu0 0.0
  %136 = vmatpush.msra.mxu0 0.0
  %137 = vmatpush.msra.mxu0 0.0
  %138 = vmatpush.msra.mxu0 0.0
  %139 = vmatpush.msra.mxu0 0.0
  %140 = vmatpush.msra.mxu0 0.0
  %141 = vmatpush.msra.mxu0 %v125
  %142 = vmatpush.msra.mxu0 %v21
  %143 = vmatmul.f32.gmra.mxu0 %v112
  %v144 = vpop.f32.mrf.mxu0
  %v145 = vadd.f32 %v109, %v144
  %146 = vmatmul.f32.gmra.mxu0 %v115
  %v147 = vpop.f32.mrf.mxu0
  %v148 = vadd.f32 %v109, %v147
  %149 = vmatmul.f32.gmra.mxu0 %v118
  %v150 = vpop.f32.mrf.mxu0
  %v151 = vadd.f32 %v109, %v150
  %152 = vmatmul.f32.gmra.mxu0 %v121
  %v153 = vpop.f32.mrf.mxu0
  %v154 = vadd.f32 %v109, %v153
  %155 = vdwg.mxu0
  %v156 = vmul.f32 %v145, 0.5
  %v157 = vmul.f32 %v148, 0.5
  %v158 = vmul.f32 %v151, 0.5
  %v159 = vmul.f32 %v154, 0.5
  %v160 = vmul.f32 %v145, 0.70710677
  %v161 = vmul.f32 %v148, 0.70710677
  %v162 = vmul.f32 %v151, 0.70710677
  %v163 = vmul.f32 %v154, 0.70710677
  %v164 = vmul.f32 %v160, %v160
  %v165 = vmin.f32 16.0, %v164
  %v166 = vmul.f32 %v165, 2.1237322e-06
  %v167 = vadd.f32 %v166, 0.00028619796
  %v168 = vmul.f32 %v165, %v167
  %v169 = vadd.f32 %v168, 0.0036580483
  %v170 = vmul.f32 %v165, %v169
  %v171 = vadd.f32 %v170, 0.05243302
  %v172 = vmul.f32 %v165, %v171
  %v173 = vadd.f32 %v172, 0.18741608
  %v174 = vmul.f32 %v165, %v173
  %v175 = vadd.f32 %v174, 1.1283791
  %v176 = vmul.f32 %v160, %v175
  %v177 = vmul.f32 %v165, 3.8918573e-05
  %v178 = vadd.f32 %v177, 0.001143296
  %v179 = vmul.f32 %v165, %v178
  %v180 = vadd.f32 %v179, 0.014752088
  %v181 = vmul.f32 %v165, %v180
  %v182 = vadd.f32 %v181, 0.112945676
  %v183 = vmul.f32 %v165, %v182
  %v184 = vadd.f32 %v183, 0.4994258
  %v185 = vmul.f32 %v165, %v184
  %v186 = vadd.f32 %v185, 1.0
  %v187 = vrcp.pop %v186
  %v188 = vmul.f32 %v186, %v187
  %v189 = vsub.f32 1.0, %v188
  %v190 = vmul.f32 %v187, %v189
  %v191 = vadd.f32 %v187, %v190
  %vm192 = vweird.f32 %v186
  %vm193 = vweird.f32 %v187
  %vm194 = vmor %vm192, %vm193
  %v195 = vsel %vm194, %v187, %v191
  %v196 = vand.u32 2147483647, %v186
  %vm197 = vcmp.eq.f32.partialorder %v196, 8.507059e+37
  %v198 = vand.u32 %v186, 2147483648
  %v199 = vor.u32 1.1754944e-38, %v198
  %v200 = vsel %vm197, %v199, %v195
  %v201 = vmul.f32 %v176, %v200
  %v202 = vmin.f32 %v201, 1.0
  %v203 = vmax.f32 %v202, -1.0
  %v204 = vmul.f32 %v161, %v161
  %v205 = vmin.f32 16.0, %v204
  %v206 = vmul.f32 %v205, 2.1237322e-06
  %v207 = vadd.f32 %v206, 0.00028619796
  %v208 = vmul.f32 %v205, %v207
  %v209 = vadd.f32 %v208, 0.0036580483
  %v210 = vmul.f32 %v205, %v209
  %v211 = vadd.f32 %v210, 0.05243302
  %v212 = vmul.f32 %v205, %v211
  %v213 = vadd.f32 %v212, 0.18741608
  %v214 = vmul.f32 %v205, %v213
  %v215 = vadd.f32 %v214, 1.1283791
  %v216 = vmul.f32 %v161, %v215
  %v217 = vmul.f32 %v205, 3.8918573e-05
  %v218 = vadd.f32 %v217, 0.001143296
  %v219 = vmul.f32 %v205, %v218
  %v220 = vadd.f32 %v219, 0.014752088
  %v221 = vmul.f32 %v205, %v220
  %v222 = vadd.f32 %v221, 0.112945676
  %v223 = vmul.f32 %v205, %v222
  %v224 = vadd.f32 %v223, 0.4994258
  %v225 = vmul.f32 %v205, %v224
  %v226 = vadd.f32 %v225, 1.0
  %v227 = vrcp.pop %v226
  %v228 = vmul.f32 %v226, %v227
  %v229 = vsub.f32 1.0, %v228
  %v230 = vmul.f32 %v227, %v229
  %v231 = vadd.f32 %v227, %v230
  %vm232 = vweird.f32 %v226
  %vm233 = vweird.f32 %v227
  %vm234 = vmor %vm232, %vm233
  %v235 = vsel %vm234, %v227, %v231
  %v236 = vand.u32 2147483647, %v226
  %vm237 = vcmp.eq.f32.partialorder %v236, 8.507059e+37
  %v238 = vand.u32 %v226, 2147483648
  %v239 = vor.u32 1.1754944e-38, %v238
  %v240 = vsel %vm237, %v239, %v235
  %v241 = vmul.f32 %v216, %v240
  %v242 = vmin.f32 %v241, 1.0
  %v243 = vmax.f32 %v242, -1.0
  %v244 = vmul.f32 %v162, %v162
  %v245 = vmin.f32 16.0, %v244
  %v246 = vmul.f32 %v245, 2.1237322e-06
  %v247 = vadd.f32 %v246, 0.00028619796
  %v248 = vmul.f32 %v245, %v247
  %v249 = vadd.f32 %v248, 0.0036580483
  %v250 = vmul.f32 %v245, %v249
  %v251 = vadd.f32 %v250, 0.05243302
  %v252 = vmul.f32 %v245, %v251
  %v253 = vadd.f32 %v252, 0.18741608
  %v254 = vmul.f32 %v245, %v253
  %v255 = vadd.f32 %v254, 1.1283791
  %v256 = vmul.f32 %v162, %v255
  %v257 = vmul.f32 %v245, 3.8918573e-05
  %v258 = vadd.f32 %v257, 0.001143296
  %v259 = vmul.f32 %v245, %v258
  %v260 = vadd.f32 %v259, 0.014752088
  %v261 = vmul.f32 %v245, %v260
  %v262 = vadd.f32 %v261, 0.112945676
  %v263 = vmul.f32 %v245, %v262
  %v264 = vadd.f32 %v263, 0.4994258
  %v265 = vmul.f32 %v245, %v264
  %v266 = vadd.f32 %v265, 1.0
  %v267 = vrcp.pop %v266
  %v268 = vmul.f32 %v266, %v267
  %v269 = vsub.f32 1.0, %v268
  %v270 = vmul.f32 %v267, %v269
  %v271 = vadd.f32 %v267, %v270
  %vm272 = vweird.f32 %v266
  %vm273 = vweird.f32 %v267
  %vm274 = vmor %vm272, %vm273
  %v275 = vsel %vm274, %v267, %v271
  %v276 = vand.u32 2147483647, %v266
  %vm277 = vcmp.eq.f32.partialorder %v276, 8.507059e+37
  %v278 = vand.u32 %v266, 2147483648
  %v279 = vor.u32 1.1754944e-38, %v278
  %v280 = vsel %vm277, %v279, %v275
  %v281 = vmul.f32 %v256, %v280
  %v282 = vmin.f32 %v281, 1.0
  %v283 = vmax.f32 %v282, -1.0
  %v284 = vmul.f32 %v163, %v163
  %v285 = vmin.f32 16.0, %v284
  %v286 = vmul.f32 %v285, 2.1237322e-06
  %v287 = vadd.f32 %v286, 0.00028619796
  %v288 = vmul.f32 %v285, %v287
  %v289 = vadd.f32 %v288, 0.0036580483
  %v290 = vmul.f32 %v285, %v289
  %v291 = vadd.f32 %v290, 0.05243302
  %v292 = vmul.f32 %v285, %v291
  %v293 = vadd.f32 %v292, 0.18741608
  %v294 = vmul.f32 %v285, %v293
  %v295 = vadd.f32 %v294, 1.1283791
  %v296 = vmul.f32 %v163, %v295
  %v297 = vmul.f32 %v285, 3.8918573e-05
  %v298 = vadd.f32 %v297, 0.001143296
  %v299 = vmul.f32 %v285, %v298
  %v300 = vadd.f32 %v299, 0.014752088
  %v301 = vmul.f32 %v285, %v300
  %v302 = vadd.f32 %v301, 0.112945676
  %v303 = vmul.f32 %v285, %v302
  %v304 = vadd.f32 %v303, 0.4994258
  %v305 = vmul.f32 %v285, %v304
  %v306 = vadd.f32 %v305, 1.0
  %v307 = vrcp.pop %v306
  %v308 = vmul.f32 %v306, %v307
  %v309 = vsub.f32 1.0, %v308
  %v310 = vmul.f32 %v307, %v309
  %v311 = vadd.f32 %v307, %v310
  %vm312 = vweird.f32 %v306
  %vm313 = vweird.f32 %v307
  %vm314 = vmor %vm312, %vm313
  %v315 = vsel %vm314, %v307, %v311
  %v316 = vand.u32 2147483647, %v306
  %vm317 = vcmp.eq.f32.partialorder %v316, 8.507059e+37
  %v318 = vand.u32 %v306, 2147483648
  %v319 = vor.u32 1.1754944e-38, %v318
  %v320 = vsel %vm317, %v319, %v315
  %v321 = vmul.f32 %v296, %v320
  %v322 = vmin.f32 %v321, 1.0
  %v323 = vmax.f32 %v322, -1.0
  %v324 = vadd.f32 %v203, 1.0
  %v325 = vadd.f32 %v243, 1.0
  %v326 = vadd.f32 %v283, 1.0
  %v327 = vadd.f32 %v323, 1.0
  %v328 = vmul.f32 %v156, %v324
  %v329 = vmul.f32 %v157, %v325
  %v330 = vmul.f32 %v158, %v326
  %v331 = vmul.f32 %v159, %v327
  %v336 = vrot.slane %v328, 4
  %v337 = vrot.slane %v329, 4
  %v338 = vrot.slane %v330, 4
  %v339 = vrot.slane %v331, 4
  %vm344 = vcmask 60416
  %v345 = vsel %vm344, %v328, -inf
  %v346 = vrot.slane %v345, 4
  %v347 = vmax.f32 %v345, %v346
  %v348 = vrot.slane %v347, 2
  %v349 = vmax.f32 %v347, %v348
  %v350 = vrot.slane %v349, 1
  %v351 = vmax.f32 %v349, %v350
  %v352 = vsel %vm344, %v336, -inf
  %v353 = vrot.slane %v352, 4
  %v354 = vmax.f32 %v352, %v353
  %v355 = vrot.slane %v354, 2
  %v356 = vmax.f32 %v354, %v355
  %v357 = vrot.slane %v356, 1
  %v358 = vmax.f32 %v356, %v357
  %v359 = vsel %vm344, %v329, -inf
  %v360 = vrot.slane %v359, 4
  %v361 = vmax.f32 %v359, %v360
  %v362 = vrot.slane %v361, 2
  %v363 = vmax.f32 %v361, %v362
  %v364 = vrot.slane %v363, 1
  %v365 = vmax.f32 %v363, %v364
  %v366 = vsel %vm344, %v337, -inf
  %v367 = vrot.slane %v366, 4
  %v368 = vmax.f32 %v366, %v367
  %v369 = vrot.slane %v368, 2
  %v370 = vmax.f32 %v368, %v369
  %v371 = vrot.slane %v370, 1
  %v372 = vmax.f32 %v370, %v371
  %v373 = vsel %vm344, %v330, -inf
  %v374 = vrot.slane %v373, 4
  %v375 = vmax.f32 %v373, %v374
  %v376 = vrot.slane %v375, 2
  %v377 = vmax.f32 %v375, %v376
  %v378 = vrot.slane %v377, 1
  %v379 = vmax.f32 %v377, %v378
  %v380 = vsel %vm344, %v338, -inf
  %v381 = vrot.slane %v380, 4
  %v382 = vmax.f32 %v380, %v381
  %v383 = vrot.slane %v382, 2
  %v384 = vmax.f32 %v382, %v383
  %v385 = vrot.slane %v384, 1
  %v386 = vmax.f32 %v384, %v385
  %v387 = vsel %vm344, %v331, -inf
  %v388 = vrot.slane %v387, 4
  %v389 = vmax.f32 %v387, %v388
  %v390 = vrot.slane %v389, 2
  %v391 = vmax.f32 %v389, %v390
  %v392 = vrot.slane %v391, 1
  %v393 = vmax.f32 %v391, %v392
  %v394 = vsel %vm344, %v339, -inf
  %v395 = vrot.slane %v394, 4
  %v396 = vmax.f32 %v394, %v395
  %v397 = vrot.slane %v396, 2
  %v398 = vmax.f32 %v396, %v397
  %v399 = vrot.slane %v398, 1
  %v400 = vmax.f32 %v398, %v399
  %vm401 = vcmp.eq.f32.partialorder %v328, %v351
  %vm402 = vcmp.eq.f32.partialorder %v336, %v358
  %vm403 = vcmp.eq.f32.partialorder %v329, %v365
  %vm404 = vcmp.eq.f32.partialorder %v337, %v372
  %vm405 = vcmp.eq.f32.partialorder %v330, %v379
  %vm406 = vcmp.eq.f32.partialorder %v338, %v386
  %vm407 = vcmp.eq.f32.partialorder %v331, %v393
  %vm408 = vcmp.eq.f32.partialorder %v339, %v400
  %v409 = vsel %vm401, %v25, 4
  %v410 = vsel %vm402, %v25, 4
  %v411 = vsel %vm403, %v25, 4
  %v412 = vsel %vm404, %v25, 4
  %v413 = vsel %vm405, %v25, 4
  %v414 = vsel %vm406, %v25, 4
  %v415 = vsel %vm407, %v25, 4
  %v416 = vsel %vm408, %v25, 4
  %v417 = vsel %vm344, %v409, 2147483647
  %v418 = vrot.slane %v417, 4
  %vm419 = vcmp.lt.s32.totalorder %v417, %v418
  %v420 = vsel %vm419, %v417, %v418
  %v421 = vrot.slane %v420, 2
  %vm422 = vcmp.lt.s32.totalorder %v420, %v421
  %v423 = vsel %vm422, %v420, %v421
  %v424 = vrot.slane %v423, 1
  %vm425 = vcmp.lt.s32.totalorder %v423, %v424
  %v426 = vsel %vm425, %v423, %v424
  %v427 = vsel %vm344, %v410, 2147483647
  %v428 = vrot.slane %v427, 4
  %vm429 = vcmp.lt.s32.totalorder %v427, %v428
  %v430 = vsel %vm429, %v427, %v428
  %v431 = vrot.slane %v430, 2
  %vm432 = vcmp.lt.s32.totalorder %v430, %v431
  %v433 = vsel %vm432, %v430, %v431
  %v434 = vrot.slane %v433, 1
  %vm435 = vcmp.lt.s32.totalorder %v433, %v434
  %v436 = vsel %vm435, %v433, %v434
  %v437 = vsel %vm344, %v411, 2147483647
  %v438 = vrot.slane %v437, 4
  %vm439 = vcmp.lt.s32.totalorder %v437, %v438
  %v440 = vsel %vm439, %v437, %v438
  %v441 = vrot.slane %v440, 2
  %vm442 = vcmp.lt.s32.totalorder %v440, %v441
  %v443 = vsel %vm442, %v440, %v441
  %v444 = vrot.slane %v443, 1
  %vm445 = vcmp.lt.s32.totalorder %v443, %v444
  %v446 = vsel %vm445, %v443, %v444
  %v447 = vsel %vm344, %v412, 2147483647
  %v448 = vrot.slane %v447, 4
  %vm449 = vcmp.lt.s32.totalorder %v447, %v448
  %v450 = vsel %vm449, %v447, %v448
  %v451 = vrot.slane %v450, 2
  %vm452 = vcmp.lt.s32.totalorder %v450, %v451
  %v453 = vsel %vm452, %v450, %v451
  %v454 = vrot.slane %v453, 1
  %vm455 = vcmp.lt.s32.totalorder %v453, %v454
  %v456 = vsel %vm455, %v453, %v454
  %v457 = vsel %vm344, %v413, 2147483647
  %v458 = vrot.slane %v457, 4
  %vm459 = vcmp.lt.s32.totalorder %v457, %v458
  %v460 = vsel %vm459, %v457, %v458
  %v461 = vrot.slane %v460, 2
  %vm462 = vcmp.lt.s32.totalorder %v460, %v461
  %v463 = vsel %vm462, %v460, %v461
  %v464 = vrot.slane %v463, 1
  %vm465 = vcmp.lt.s32.totalorder %v463, %v464
  %v466 = vsel %vm465, %v463, %v464
  %v467 = vsel %vm344, %v414, 2147483647
  %v468 = vrot.slane %v467, 4
  %vm469 = vcmp.lt.s32.totalorder %v467, %v468
  %v470 = vsel %vm469, %v467, %v468
  %v471 = vrot.slane %v470, 2
  %vm472 = vcmp.lt.s32.totalorder %v470, %v471
  %v473 = vsel %vm472, %v470, %v471
  %v474 = vrot.slane %v473, 1
  %vm475 = vcmp.lt.s32.totalorder %v473, %v474
  %v476 = vsel %vm475, %v473, %v474
  %v477 = vsel %vm344, %v415, 2147483647
  %v478 = vrot.slane %v477, 4
  %vm479 = vcmp.lt.s32.totalorder %v477, %v478
  %v480 = vsel %vm479, %v477, %v478
  %v481 = vrot.slane %v480, 2
  %vm482 = vcmp.lt.s32.totalorder %v480, %v481
  %v483 = vsel %vm482, %v480, %v481
  %v484 = vrot.slane %v483, 1
  %vm485 = vcmp.lt.s32.totalorder %v483, %v484
  %v486 = vsel %vm485, %v483, %v484
  %v487 = vsel %vm344, %v416, 2147483647
  %v488 = vrot.slane %v487, 4
  %vm489 = vcmp.lt.s32.totalorder %v487, %v488
  %v490 = vsel %vm489, %v487, %v488
  %v491 = vrot.slane %v490, 2
  %vm492 = vcmp.lt.s32.totalorder %v490, %v491
  %v493 = vsel %vm492, %v490, %v491
  %v494 = vrot.slane %v493, 1
  %vm495 = vcmp.lt.s32.totalorder %v493, %v494
  %v496 = vsel %vm495, %v493, %v494
  %vm497 = vcmp.eq.s32.totalorder %v25, %v426
  %vm498 = vcmp.eq.s32.totalorder %v25, %v436
  %vm499 = vcmp.eq.s32.totalorder %v25, %v446
  %vm500 = vcmp.eq.s32.totalorder %v25, %v456
  %vm501 = vcmp.eq.s32.totalorder %v25, %v466
  %vm502 = vcmp.eq.s32.totalorder %v25, %v476
  %vm503 = vcmp.eq.s32.totalorder %v25, %v486
  %vm504 = vcmp.eq.s32.totalorder %v25, %v496
  %v505 = vsel %vm497, 1, 0
  %v506 = vsel %vm498, 1, 0
  %v507 = vsel %vm499, 1, 0
  %v508 = vsel %vm500, 1, 0
  %v509 = vsel %vm501, 1, 0
  %v510 = vsel %vm502, 1, 0
  %v511 = vsel %vm503, 1, 0
  %v512 = vsel %vm504, 1, 0
  %v513 = vcvt.s32.f32 %v505
  %v514 = vcvt.s32.f32 %v506
  %v515 = vcvt.s32.f32 %v507
  %v516 = vcvt.s32.f32 %v508
  %v517 = vcvt.s32.f32 %v509
  %v518 = vcvt.s32.f32 %v510
  %v519 = vcvt.s32.f32 %v511
  %v520 = vcvt.s32.f32 %v512
  %v521 = vld [vmem:[%s2 + $0x10] sm:$0xff]
  %v522 = vld [vmem:[%s2 + $0x18] sm:$0xff]
  %v523 = vld [vmem:[%s2 + $0x20] sm:$0xff]
  %v524 = vld [vmem:[%s2 + $0x98] sm:$0x1]
  %v525 = vand.u32 %v25, 3
  %vm526 = vcmp.eq.s32.totalorder %v525, 0
  %vm535 = vcmask 1041409
  %v536 = vsel %vm535, %v358, %v351
  %vm537 = vcmask 1042434
  %v538 = vsel %vm537, %v365, %v536
  %vm539 = vcmask 1043459
  %v540 = vsel %vm539, %v372, %v538
  %vm541 = vcmask 1044484
  %v542 = vsel %vm541, %v379, %v540
  %vm543 = vcmask 1045509
  %v544 = vsel %vm543, %v386, %v542
  %vm545 = vcmask 1046534
  %v546 = vsel %vm545, %v393, %v544
  %vm547 = vcmask 1047559
  %v548 = vsel %vm547, %v400, %v546
  %v550 = vrot.slane %v548, 7
  %v551 = vsel %vm526, 0.0, %v550
  %vm552 = vcmp.eq.s32.totalorder %v525, 3
  %v553 = vrot.slane %v548, 1
  %v554 = vsel %vm552, 0.0, %v553
  %555 = vrot.lane.b32.xlu0 %v548, 8
  %v556 = vpop.permute.xlu0 %555
  %559 = vrot.lane.b32.xlu0 %v554, 16
  %v560 = vpop.permute.xlu0 %559
  %v562 = vsel %vm104, %v551, %v556
  %vm563 = vcmask 130048
  %v564 = vsel %vm563, %v562, %v560
  %v565 = vperm.slane %v524, 0
  %vm566 = vcmask 195584
  %v568 = vsel %vm566, %v564, 0
  %570 = vmatpush.msra.mxu0 0.0
  %571 = vmatpush.msra.mxu0 0.0
  %572 = vmatpush.msra.mxu0 0.0
  %573 = vmatpush.msra.mxu0 0.0
  %574 = vmatpush.msra.mxu0 0.0
  %575 = vmatpush.msra.mxu0 0.0
  %576 = vmatpush.msra.mxu0 0.0
  %577 = vmatpush.msra.mxu0 0.0
  %578 = vmatpush.msra.mxu0 0.0
  %579 = vmatpush.msra.mxu0 0.0
  %580 = vmatpush.msra.mxu0 0.0
  %581 = vmatpush.msra.mxu0 0.0
  %582 = vmatpush.msra.mxu0 0.0
  %583 = vmatpush.msra.mxu0 %v523
  %584 = vmatpush.msra.mxu0 %v522
  %585 = vmatpush.msra.mxu0 %v521
  %586 = vmatmul.f32.gmra.mxu0 %v568
  %v587 = vpop.f32.mrf.mxu0
  %v588 = vadd.f32 %v565, %v587
  %589 = vdwg.mxu0
  %v590 = vmul.f32 %v588, 0.5
  %v591 = vmul.f32 %v588, 0.70710677
  %v592 = vmul.f32 %v591, %v591
  %v593 = vmin.f32 16.0, %v592
  %v594 = vmul.f32 %v593, 2.1237322e-06
  %v595 = vadd.f32 %v594, 0.00028619796
  %v596 = vmul.f32 %v593, %v595
  %v597 = vadd.f32 %v596, 0.0036580483
  %v598 = vmul.f32 %v593, %v597
  %v599 = vadd.f32 %v598, 0.05243302
  %v600 = vmul.f32 %v593, %v599
  %v601 = vadd.f32 %v600, 0.18741608
  %v602 = vmul.f32 %v593, %v601
  %v603 = vadd.f32 %v602, 1.1283791
  %v604 = vmul.f32 %v591, %v603
  %v605 = vmul.f32 %v593, 3.8918573e-05
  %v606 = vadd.f32 %v605, 0.001143296
  %v607 = vmul.f32 %v593, %v606
  %v608 = vadd.f32 %v607, 0.014752088
  %v609 = vmul.f32 %v593, %v608
  %v610 = vadd.f32 %v609, 0.112945676
  %v611 = vmul.f32 %v593, %v610
  %v612 = vadd.f32 %v611, 0.4994258
  %v613 = vmul.f32 %v593, %v612
  %v614 = vadd.f32 %v613, 1.0
  %v615 = vrcp.pop %v614
  %v616 = vmul.f32 %v614, %v615
  %v617 = vsub.f32 1.0, %v616
  %v618 = vmul.f32 %v615, %v617
  %v619 = vadd.f32 %v615, %v618
  %vm620 = vweird.f32 %v614
  %vm621 = vweird.f32 %v615
  %vm622 = vmor %vm620, %vm621
  %v623 = vsel %vm622, %v615, %v619
  %v624 = vand.u32 2147483647, %v614
  %vm625 = vcmp.eq.f32.partialorder %v624, 8.507059e+37
  %v626 = vand.u32 %v614, 2147483648
  %v627 = vor.u32 1.1754944e-38, %v626
  %v628 = vsel %vm625, %v627, %v623
  %v629 = vmul.f32 %v604, %v628
  %v630 = vmin.f32 %v629, 1.0
  %v631 = vmax.f32 %v630, -1.0
  %v632 = vadd.f32 %v631, 1.0
  %v633 = vmul.f32 %v590, %v632
  %v635 = vrot.slane %v633, 4
  %vm637 = vcmask 125952
  %v638 = vsel %vm637, %v633, -inf
  %v639 = vrot.slane %v638, 4
  %v640 = vmax.f32 %v638, %v639
  %v641 = vrot.slane %v640, 2
  %v642 = vmax.f32 %v640, %v641
  %v643 = vrot.slane %v642, 1
  %v644 = vmax.f32 %v642, %v643
  %v645 = vsel %vm637, %v635, -inf
  %v646 = vrot.slane %v645, 4
  %v647 = vmax.f32 %v645, %v646
  %v648 = vrot.slane %v647, 2
  %v649 = vmax.f32 %v647, %v648
  %v650 = vrot.slane %v649, 1
  %v651 = vmax.f32 %v649, %v650
  %vm652 = vcmp.eq.f32.partialorder %v633, %v644
  %vm653 = vcmp.eq.f32.partialorder %v635, %v651
  %v654 = vsel %vm652, %v25, 4
  %v655 = vsel %vm653, %v25, 4
  %v656 = vsel %vm637, %v654, 2147483647
  %v657 = vrot.slane %v656, 4
  %vm658 = vcmp.lt.s32.totalorder %v656, %v657
  %v659 = vsel %vm658, %v656, %v657
  %v660 = vrot.slane %v659, 2
  %vm661 = vcmp.lt.s32.totalorder %v659, %v660
  %v662 = vsel %vm661, %v659, %v660
  %v663 = vrot.slane %v662, 1
  %vm664 = vcmp.lt.s32.totalorder %v662, %v663
  %v665 = vsel %vm664, %v662, %v663
  %v666 = vsel %vm637, %v655, 2147483647
  %v667 = vrot.slane %v666, 4
  %vm668 = vcmp.lt.s32.totalorder %v666, %v667
  %v669 = vsel %vm668, %v666, %v667
  %v670 = vrot.slane %v669, 2
  %vm671 = vcmp.lt.s32.totalorder %v669, %v670
  %v672 = vsel %vm671, %v669, %v670
  %v673 = vrot.slane %v672, 1
  %vm674 = vcmp.lt.s32.totalorder %v672, %v673
  %v675 = vsel %vm674, %v672, %v673
  %vm676 = vcmp.eq.s32.totalorder %v25, %v665
  %vm677 = vcmp.eq.s32.totalorder %v25, %v675
  %v678 = vsel %vm676, 1, 0
  %v679 = vsel %vm677, 1, 0
  %v680 = vcvt.s32.f32 %v678
  %v681 = vcvt.s32.f32 %v679
  %v682 = vld [vmem:[%s2 + $0x28] sm:$0xff]
  %v683 = vld [vmem:[%s2 + $0x30] sm:$0xff]
  %v684 = vld [vmem:[%s2 + $0xa0] sm:$0x1]
  %v685 = vperm.slane %v684, 0
  %v688 = vsel %vm535, %v651, %v644
  %v689 = vsel %vm563, %v688, 0
  %691 = vmatpush.msra.mxu0 0.0
  %692 = vmatpush.msra.mxu0 0.0
  %693 = vmatpush.msra.mxu0 0.0
  %694 = vmatpush.msra.mxu0 0.0
  %695 = vmatpush.msra.mxu0 0.0
  %696 = vmatpush.msra.mxu0 0.0
  %697 = vmatpush.msra.mxu0 0.0
  %698 = vmatpush.msra.mxu0 0.0
  %699 = vmatpush.msra.mxu0 0.0
  %700 = vmatpush.msra.mxu0 0.0
  %701 = vmatpush.msra.mxu0 0.0
  %702 = vmatpush.msra.mxu0 0.0
  %703 = vmatpush.msra.mxu0 0.0
  %704 = vmatpush.msra.mxu0 0.0
  %705 = vmatpush.msra.mxu0 %v683
  %706 = vmatpush.msra.mxu0 %v682
  %707 = vmatmul.f32.gmra.mxu0 %v689
  %v708 = vpop.f32.mrf.mxu0
  %v709 = vadd.f32 %v685, %v708
  %710 = vdwg.mxu0
  %v711 = vmul.f32 %v709, 0.5
  %v712 = vmul.f32 %v709, 0.70710677
  %v713 = vmul.f32 %v712, %v712
  %v714 = vmin.f32 16.0, %v713
  %v715 = vmul.f32 %v714, 2.1237322e-06
  %v716 = vadd.f32 %v715, 0.00028619796
  %v717 = vmul.f32 %v714, %v716
  %v718 = vadd.f32 %v717, 0.0036580483
  %v719 = vmul.f32 %v714, %v718
  %v720 = vadd.f32 %v719, 0.05243302
  %v721 = vmul.f32 %v714, %v720
  %v722 = vadd.f32 %v721, 0.18741608
  %v723 = vmul.f32 %v714, %v722
  %v724 = vadd.f32 %v723, 1.1283791
  %v725 = vmul.f32 %v712, %v724
  %v726 = vmul.f32 %v714, 3.8918573e-05
  %v727 = vadd.f32 %v726, 0.001143296
  %v728 = vmul.f32 %v714, %v727
  %v729 = vadd.f32 %v728, 0.014752088
  %v730 = vmul.f32 %v714, %v729
  %v731 = vadd.f32 %v730, 0.112945676
  %v732 = vmul.f32 %v714, %v731
  %v733 = vadd.f32 %v732, 0.4994258
  %v734 = vmul.f32 %v714, %v733
  %v735 = vadd.f32 %v734, 1.0
  %v736 = vrcp.pop %v735
  %v737 = vmul.f32 %v735, %v736
  %v738 = vsub.f32 1.0, %v737
  %v739 = vmul.f32 %v736, %v738
  %v740 = vadd.f32 %v736, %v739
  %vm741 = vweird.f32 %v735
  %vm742 = vweird.f32 %v736
  %vm743 = vmor %vm741, %vm742
  %v744 = vsel %vm743, %v736, %v740
  %v745 = vand.u32 2147483647, %v735
  %vm746 = vcmp.eq.f32.partialorder %v745, 8.507059e+37
  %v747 = vand.u32 %v735, 2147483648
  %v748 = vor.u32 1.1754944e-38, %v747
  %v749 = vsel %vm746, %v748, %v744
  %v750 = vmul.f32 %v725, %v749
  %v751 = vmin.f32 %v750, 1.0
  %v752 = vmax.f32 %v751, -1.0
  %v753 = vadd.f32 %v752, 1.0
  %v754 = vmul.f32 %v711, %v753
  %v755 = vld [vmem:[%s2 + $0x38] sm:$0xff]
  %v756 = vld [vmem:[%s2 + $0xa8] sm:$0x1]
  %v757 = vperm.slane %v756, 0
  %v759 = vsel %vm104, %v754, 0
  %761 = vmatpush.msra.mxu0 0.0
  %762 = vmatpush.msra.mxu0 0.0
  %763 = vmatpush.msra.mxu0 0.0
  %764 = vmatpush.msra.mxu0 0.0
  %765 = vmatpush.msra.mxu0 0.0
  %766 = vmatpush.msra.mxu0 0.0
  %767 = vmatpush.msra.mxu0 0.0
  %768 = vmatpush.msra.mxu0 0.0
  %769 = vmatpush.msra.mxu0 0.0
  %770 = vmatpush.msra.mxu0 0.0
  %771 = vmatpush.msra.mxu0 0.0
  %772 = vmatpush.msra.mxu0 0.0
  %773 = vmatpush.msra.mxu0 0.0
  %774 = vmatpush.msra.mxu0 0.0
  %775 = vmatpush.msra.mxu0 0.0
  %776 = vmatpush.msra.mxu0 %v755
  %777 = vmatmul.f32.gmra.mxu0 %v759
  %v778 = vpop.f32.mrf.mxu0
  %v779 = vadd.f32 %v757, %v778
  %780 = vdwg.mxu0
  %vm781 = vcmp.gt.f32.partialorder %v779, 20.0
  %v782 = vmin.f32 %v779, 20.0
  %v783 = vmul.f32 %v782, 1.442695
  %v784 = vpow.pop %v783
  %v785 = vadd.f32 %v784, 1.0
  %v786 = vlog2.pop %v785
  %v787 = vmul.f32 %v786, 0.6931472
  %v788 = vsel %vm781, %v779, %v787
  %v789 = vmul.f32 %v788, 0.5
  %v790 = vmul.f32 %v789, 1.442695
  %v791 = vpow.pop %v790
  %793 = vrot.lane.b32.xlu0 %v20, 8
  %v794 = vpop.permute.xlu0 %793
  %v796 = vmul.f32 %v791, %v794
  %798 = vrot.lane.b32.xlu0 %v796, 120
  %v799 = vpop.permute.xlu0 %798
  %v801 = vadd.f32 %v779, %v799
  %v802 = vmul.f32 %v788, -0.5
  %v803 = vsub.f32 %v801, %v779
  %v804 = vmul.f32 %v803, %v803
  %v805 = vmul.f32 %v788, 1.442695
  %v806 = vpow.pop %v805
  %v807 = vmul.f32 %v806, 2.0
  %809 = vrot.lane.b32.xlu0 %v807, 120
  %v810 = vpop.permute.xlu0 %809
  %v812 = vrcp.pop %v810
  %v813 = vmul.f32 %v810, %v812
  %v814 = vsub.f32 1.0, %v813
  %v815 = vmul.f32 %v812, %v814
  %v816 = vadd.f32 %v812, %v815
  %vm817 = vweird.f32 %v810
  %vm818 = vweird.f32 %v812
  %vm819 = vmor %vm817, %vm818
  %v820 = vsel %vm819, %v812, %v816
  %v821 = vand.u32 2147483647, %v810
  %vm822 = vcmp.eq.f32.partialorder %v821, 8.507059e+37
  %v823 = vand.u32 %v810, 2147483648
  %v824 = vor.u32 1.1754944e-38, %v823
  %v825 = vsel %vm822, %v824, %v820
  %v826 = vmul.f32 %v804, %v825
  %828 = vrot.lane.b32.xlu0 %v826, 8
  %v829 = vpop.permute.xlu0 %828
  %v831 = vsub.f32 %v802, %v829
  %v832 = vmul.f32 %v801, 0.5
  %v833 = vmul.f32 %v832, %v801
  %835 = vrot.lane.b32.xlu0 %v833, 8
  %v836 = vpop.permute.xlu0 %835
  %v838 = vadd.f32 %v831, %v836
  %840 = vrot.lane.b32.xlu0 %v838, 120
  %v841 = vpop.permute.xlu0 %840
  %vm843 = vcmask 58368
  %v844 = vsel %vm843, %v841, 0.0
  %845 = vadd.xlane.f32.xlu0 %v844
  %v846 = vpop.xlane.xlu0 %845
  %v847 = vld [vmem:[%s2 + $0x40] sm:$0xff]
  %v848 = vld [vmem:[%s2 + $0xb0] sm:$0x1]
  %v849 = vperm.slane %v848, 0
  %v851 = vsel %vm104, %v801, 0
  %853 = vmatpush.msra.mxu0 0.0
  %854 = vmatpush.msra.mxu0 0.0
  %855 = vmatpush.msra.mxu0 0.0
  %856 = vmatpush.msra.mxu0 0.0
  %857 = vmatpush.msra.mxu0 0.0
  %858 = vmatpush.msra.mxu0 0.0
  %859 = vmatpush.msra.mxu0 0.0
  %860 = vmatpush.msra.mxu0 0.0
  %861 = vmatpush.msra.mxu0 0.0
  %862 = vmatpush.msra.mxu0 0.0
  %863 = vmatpush.msra.mxu0 0.0
  %864 = vmatpush.msra.mxu0 0.0
  %865 = vmatpush.msra.mxu0 0.0
  %866 = vmatpush.msra.mxu0 0.0
  %867 = vmatpush.msra.mxu0 0.0
  %868 = vmatpush.msra.mxu0 %v847
  %869 = vmatmul.f32.gmra.mxu0 %v851
  %v870 = vpop.f32.mrf.mxu0
  %v871 = vadd.f32 %v849, %v870
  %872 = vdwg.mxu0
  %v873 = vmul.f32 %v871, 0.5
  %v874 = vmul.f32 %v871, 0.70710677
  %v875 = vmul.f32 %v874, %v874
  %v876 = vmin.f32 16.0, %v875
  %v877 = vmul.f32 %v876, 2.1237322e-06
  %v878 = vadd.f32 %v877, 0.00028619796
  %v879 = vmul.f32 %v876, %v878
  %v880 = vadd.f32 %v879, 0.0036580483
  %v881 = vmul.f32 %v876, %v880
  %v882 = vadd.f32 %v881, 0.05243302
  %v883 = vmul.f32 %v876, %v882
  %v884 = vadd.f32 %v883, 0.18741608
  %v885 = vmul.f32 %v876, %v884
  %v886 = vadd.f32 %v885, 1.1283791
  %v887 = vmul.f32 %v874, %v886
  %v888 = vmul.f32 %v876, 3.8918573e-05
  %v889 = vadd.f32 %v888, 0.001143296
  %v890 = vmul.f32 %v876, %v889
  %v891 = vadd.f32 %v890, 0.014752088
  %v892 = vmul.f32 %v876, %v891
  %v893 = vadd.f32 %v892, 0.112945676
  %v894 = vmul.f32 %v876, %v893
  %v895 = vadd.f32 %v894, 0.4994258
  %v896 = vmul.f32 %v876, %v895
  %v897 = vadd.f32 %v896, 1.0
  %v898 = vrcp.pop %v897
  %v899 = vmul.f32 %v897, %v898
  %v900 = vsub.f32 1.0, %v899
  %v901 = vmul.f32 %v898, %v900
  %v902 = vadd.f32 %v898, %v901
  %vm903 = vweird.f32 %v897
  %vm904 = vweird.f32 %v898
  %vm905 = vmor %vm903, %vm904
  %v906 = vsel %vm905, %v898, %v902
  %v907 = vand.u32 2147483647, %v897
  %vm908 = vcmp.eq.f32.partialorder %v907, 8.507059e+37
  %v909 = vand.u32 %v897, 2147483648
  %v910 = vor.u32 1.1754944e-38, %v909
  %v911 = vsel %vm908, %v910, %v906
  %v912 = vmul.f32 %v887, %v911
  %v913 = vmin.f32 %v912, 1.0
  %v914 = vmax.f32 %v913, -1.0
  %v915 = vadd.f32 %v914, 1.0
  %v916 = vmul.f32 %v873, %v915
  %v918 = vrot.slane %v916, 1
  %v919 = vperm.slane %v916, 0
  %v920 = vperm.slane %v918, 0
  %v923 = vmul.f32 %v680, %v919
  %v924 = vmul.f32 %v681, %v920
  %v925 = vld [vmem:[%s2 + $0x48] sm:$0xff]
  %v926 = vld [vmem:[%s2 + $0x50] sm:$0xff]
  %v927 = vld [vmem:[%s2 + $0x58] sm:$0xff]
  %v928 = vld [vmem:[%s2 + $0x60] sm:$0xff]
  %v929 = vld [vmem:[%s2 + $0x68] sm:$0xff]
  %v930 = vld [vmem:[%s2 + $0x70] sm:$0xff]
  %v931 = vld [vmem:[%s2 + $0xb8] sm:$0x1]
  %934 = vst [vmem:[#allocation1] ss:$2 sm:$0xff] %v923
  %s935 = scalar_lea.vmem [#allocation1], 1
  %936 = vst [vmem:[%s935] ss:$2 sm:$0xff] %v924
  %v937 = vld.sshfl [vmem:[#allocation1] sm:$0xff pattern:$0x75316420]
  %v939 = vrot.slane %v937, 7
  %v940 = vsel %vm526, 0.0, %v939
  %941 = vst [vmem:[#allocation1] ss:$2 sm:$0xff] %v923
  %s942 = scalar_lea.vmem [#allocation1], 1
  %943 = vst [vmem:[%s942] ss:$2 sm:$0xff] %v924
  %v944 = vld.sshfl [vmem:[#allocation1] sm:$0xff pattern:$0x75316420]
  %v946 = vrot.slane %v944, 1
  %v947 = vsel %vm552, 0.0, %v946
  %948 = vst [vmem:[#allocation1] ss:$2 sm:$0xff] %v923
  %s949 = scalar_lea.vmem [#allocation1], 1
  %950 = vst [vmem:[%s949] ss:$2 sm:$0xff] %v924
  %v951 = vld.sshfl [vmem:[#allocation1] sm:$0xff pattern:$0x75316420]
  %952 = vrot.lane.b32.xlu0 %v951, 16
  %v953 = vpop.permute.xlu0 %952
  %956 = vrot.lane.b32.xlu0 %v947, 32
  %v957 = vpop.permute.xlu0 %956
  %v959 = vsel %vm563, %v940, %v953
  %vm960 = vcmask 261120
  %v961 = vsel %vm960, %v959, %v957
  %v962 = vperm.slane %v931, 0
  %vm963 = vcmask 392192
  %v965 = vsel %vm963, %v961, 0
  %967 = vmatpush.msra.mxu0 0.0
  %968 = vmatpush.msra.mxu0 0.0
  %969 = vmatpush.msra.mxu0 0.0
  %970 = vmatpush.msra.mxu0 0.0
  %971 = vmatpush.msra.mxu0 0.0
  %972 = vmatpush.msra.mxu0 0.0
  %973 = vmatpush.msra.mxu0 0.0
  %974 = vmatpush.msra.mxu0 0.0
  %975 = vmatpush.msra.mxu0 0.0
  %976 = vmatpush.msra.mxu0 0.0
  %977 = vmatpush.msra.mxu0 %v930
  %978 = vmatpush.msra.mxu0 %v929
  %979 = vmatpush.msra.mxu0 %v928
  %980 = vmatpush.msra.mxu0 %v927
  %981 = vmatpush.msra.mxu0 %v926
  %982 = vmatpush.msra.mxu0 %v925
  %983 = vmatmul.f32.gmra.mxu0 %v965
  %v984 = vpop.f32.mrf.mxu0
  %v985 = vadd.f32 %v962, %v984
  %986 = vdwg.mxu0
  %v987 = vmul.f32 %v985, 0.5
  %v988 = vmul.f32 %v985, 0.70710677
  %v989 = vmul.f32 %v988, %v988
  %v990 = vmin.f32 16.0, %v989
  %v991 = vmul.f32 %v990, 2.1237322e-06
  %v992 = vadd.f32 %v991, 0.00028619796
  %v993 = vmul.f32 %v990, %v992
  %v994 = vadd.f32 %v993, 0.0036580483
  %v995 = vmul.f32 %v990, %v994
  %v996 = vadd.f32 %v995, 0.05243302
  %v997 = vmul.f32 %v990, %v996
  %v998 = vadd.f32 %v997, 0.18741608
  %v999 = vmul.f32 %v990, %v998
  %v1000 = vadd.f32 %v999, 1.1283791
  %v1001 = vmul.f32 %v988, %v1000
  %v1002 = vmul.f32 %v990, 3.8918573e-05
  %v1003 = vadd.f32 %v1002, 0.001143296
  %v1004 = vmul.f32 %v990, %v1003
  %v1005 = vadd.f32 %v1004, 0.014752088
  %v1006 = vmul.f32 %v990, %v1005
  %v1007 = vadd.f32 %v1006, 0.112945676
  %v1008 = vmul.f32 %v990, %v1007
  %v1009 = vadd.f32 %v1008, 0.4994258
  %v1010 = vmul.f32 %v990, %v1009
  %v1011 = vadd.f32 %v1010, 1.0
  %v1012 = vrcp.pop %v1011
  %v1013 = vmul.f32 %v1011, %v1012
  %v1014 = vsub.f32 1.0, %v1013
  %v1015 = vmul.f32 %v1012, %v1014
  %v1016 = vadd.f32 %v1012, %v1015
  %vm1017 = vweird.f32 %v1011
  %vm1018 = vweird.f32 %v1012
  %vm1019 = vmor %vm1017, %vm1018
  %v1020 = vsel %vm1019, %v1012, %v1016
  %v1021 = vand.u32 2147483647, %v1011
  %vm1022 = vcmp.eq.f32.partialorder %v1021, 8.507059e+37
  %v1023 = vand.u32 %v1011, 2147483648
  %v1024 = vor.u32 1.1754944e-38, %v1023
  %v1025 = vsel %vm1022, %v1024, %v1020
  %v1026 = vmul.f32 %v1001, %v1025
  %v1027 = vmin.f32 %v1026, 1.0
  %v1028 = vmax.f32 %v1027, -1.0
  %v1029 = vadd.f32 %v1028, 1.0
  %v1030 = vmul.f32 %v987, %v1029
  %v1032 = vrot.slane %v1030, 1
  %v1033 = vrot.slane %v1030, 2
  %v1034 = vrot.slane %v1030, 3
  %v1035 = vrot.slane %v1030, 4
  %v1036 = vrot.slane %v1030, 5
  %v1037 = vrot.slane %v1030, 6
  %v1038 = vrot.slane %v1030, 7
  %v1039 = vperm.slane %v1030, 0
  %v1040 = vperm.slane %v1032, 0
  %v1041 = vperm.slane %v1033, 0
  %v1042 = vperm.slane %v1034, 0
  %v1043 = vperm.slane %v1035, 0
  %v1044 = vperm.slane %v1036, 0
  %v1045 = vperm.slane %v1037, 0
  %v1046 = vperm.slane %v1038, 0
  %v1055 = vmul.f32 %v513, %v1039
  %v1056 = vmul.f32 %v514, %v1040
  %v1057 = vmul.f32 %v515, %v1041
  %v1058 = vmul.f32 %v516, %v1042
  %v1059 = vmul.f32 %v517, %v1043
  %v1060 = vmul.f32 %v518, %v1044
  %v1061 = vmul.f32 %v519, %v1045
  %v1062 = vmul.f32 %v520, %v1046
  %v1063 = vld [vmem:[%s2 + $0x78] sm:$0xff]
  %v1064 = vld [vmem:[%s2 + $0x80] sm:$0xff]
  %v1065 = vld [vmem:[%s2 + $0x88] sm:$0xff]
  %v1066 = vld [vmem:[%s2 + $0xc0] sm:$0x1]
  %1075 = vst [vmem:[#allocation1] ss:$2 sm:$0xff] %v1055
  %s1076 = scalar_lea.vmem [#allocation1], 1
  %1077 = vst [vmem:[%s1076] ss:$2 sm:$0xff] %v1056
  %s1078 = scalar_lea.vmem [#allocation1], 16
  %1079 = vst [vmem:[%s1078] ss:$2 sm:$0xff] %v1057
  %s1080 = scalar_lea.vmem [#allocation1], 17
  %1081 = vst [vmem:[%s1080] ss:$2 sm:$0xff] %v1058
  %s1082 = scalar_lea.vmem [#allocation1], 32
  %1083 = vst [vmem:[%s1082] ss:$2 sm:$0xff] %v1059
  %s1084 = scalar_lea.vmem [#allocation1], 33
  %1085 = vst [vmem:[%s1084] ss:$2 sm:$0xff] %v1060
  %s1086 = scalar_lea.vmem [#allocation1], 48
  %1087 = vst [vmem:[%s1086] ss:$2 sm:$0xff] %v1061
  %s1088 = scalar_lea.vmem [#allocation1], 49
  %1089 = vst [vmem:[%s1088] ss:$2 sm:$0xff] %v1062
  %v1090 = vld.sshfl [vmem:[#allocation1] sm:$0xff pattern:$0x75316420]
  %v1091 = vld.sshfl [vmem:[#allocation1 + $0x10] sm:$0xff pattern:$0x75316420]
  %v1092 = vld.sshfl [vmem:[#allocation1 + $0x20] sm:$0xff pattern:$0x75316420]
  %v1093 = vld.sshfl [vmem:[#allocation1 + $0x30] sm:$0xff pattern:$0x75316420]
  %v1098 = vrot.slane %v1090, 7
  %v1099 = vrot.slane %v1091, 7
  %v1100 = vrot.slane %v1092, 7
  %v1101 = vrot.slane %v1093, 7
  %v1102 = vsel %vm41, %v1100, %v1101
  %v1103 = vsel %vm41, %v1099, %v1100
  %v1104 = vsel %vm41, %v1098, %v1099
  %v1105 = vsel %vm41, %v1101, %v1098
  %v1106 = vsel %vm33, 0.0, %v1105
  %v1107 = vsel %vm34, 0.0, %v1104
  %v1108 = vsel %vm35, 0.0, %v1103
  %v1109 = vsel %vm36, 0.0, %v1102
  %1110 = vst [vmem:[#allocation1] ss:$2 sm:$0xff] %v1055
  %s1111 = scalar_lea.vmem [#allocation1], 1
  %1112 = vst [vmem:[%s1111] ss:$2 sm:$0xff] %v1056
  %s1113 = scalar_lea.vmem [#allocation1], 16
  %1114 = vst [vmem:[%s1113] ss:$2 sm:$0xff] %v1057
  %s1115 = scalar_lea.vmem [#allocation1], 17
  %1116 = vst [vmem:[%s1115] ss:$2 sm:$0xff] %v1058
  %s1117 = scalar_lea.vmem [#allocation1], 32
  %1118 = vst [vmem:[%s1117] ss:$2 sm:$0xff] %v1059
  %s1119 = scalar_lea.vmem [#allocation1], 33
  %1120 = vst [vmem:[%s1119] ss:$2 sm:$0xff] %v1060
  %s1121 = scalar_lea.vmem [#allocation1], 48
  %1122 = vst [vmem:[%s1121] ss:$2 sm:$0xff] %v1061
  %s1123 = scalar_lea.vmem [#allocation1], 49
  %1124 = vst [vmem:[%s1123] ss:$2 sm:$0xff] %v1062
  %v1125 = vld.sshfl [vmem:[#allocation1] sm:$0xff pattern:$0x75316420]
  %v1126 = vld.sshfl [vmem:[#allocation1 + $0x10] sm:$0xff pattern:$0x75316420]
  %v1127 = vld.sshfl [vmem:[#allocation1 + $0x20] sm:$0xff pattern:$0x75316420]
  %v1128 = vld.sshfl [vmem:[#allocation1 + $0x30] sm:$0xff pattern:$0x75316420]
  %v1133 = vrot.slane %v1125, 1
  %v1134 = vrot.slane %v1126, 1
  %v1135 = vrot.slane %v1127, 1
  %v1136 = vrot.slane %v1128, 1
  %v1137 = vsel %vm58, %v1135, %v1136
  %v1138 = vsel %vm58, %v1134, %v1135
  %v1139 = vsel %vm58, %v1133, %v1134
  %v1140 = vsel %vm58, %v1136, %v1133
  %v1141 = vsel %vm50, 0.0, %v1139
  %v1142 = vsel %vm51, 0.0, %v1138
  %v1143 = vsel %vm52, 0.0, %v1137
  %v1144 = vsel %vm53, 0.0, %v1140
  %1145 = vst [vmem:[#allocation1] ss:$2 sm:$0xff] %v1055
  %s1146 = scalar_lea.vmem [#allocation1], 1
  %1147 = vst [vmem:[%s1146] ss:$2 sm:$0xff] %v1056
  %s1148 = scalar_lea.vmem [#allocation1], 16
  %1149 = vst [vmem:[%s1148] ss:$2 sm:$0xff] %v1057
  %s1150 = scalar_lea.vmem [#allocation1], 17
  %1151 = vst [vmem:[%s1150] ss:$2 sm:$0xff] %v1058
  %s1152 = scalar_lea.vmem [#allocation1], 32
  %1153 = vst [vmem:[%s1152] ss:$2 sm:$0xff] %v1059
  %s1154 = scalar_lea.vmem [#allocation1], 33
  %1155 = vst [vmem:[%s1154] ss:$2 sm:$0xff] %v1060
  %s1156 = scalar_lea.vmem [#allocation1], 48
  %1157 = vst [vmem:[%s1156] ss:$2 sm:$0xff] %v1061
  %s1158 = scalar_lea.vmem [#allocation1], 49
  %1159 = vst [vmem:[%s1158] ss:$2 sm:$0xff] %v1062
  %v1160 = vld.sshfl [vmem:[#allocation1] sm:$0xff pattern:$0x75316420]
  %v1161 = vld.sshfl [vmem:[#allocation1 + $0x10] sm:$0xff pattern:$0x75316420]
  %v1162 = vld.sshfl [vmem:[#allocation1 + $0x20] sm:$0xff pattern:$0x75316420]
  %v1163 = vld.sshfl [vmem:[#allocation1 + $0x30] sm:$0xff pattern:$0x75316420]
  %1164 = vrot.lane.b32.xlu0 %v1160, 8
  %v1165 = vpop.permute.xlu0 %1164
  %1166 = vrot.lane.b32.xlu0 %v1161, 8
  %v1167 = vpop.permute.xlu0 %1166
  %1168 = vrot.lane.b32.xlu0 %v1162, 8
  %v1169 = vpop.permute.xlu0 %1168
  %1170 = vrot.lane.b32.xlu0 %v1163, 8
  %v1171 = vpop.permute.xlu0 %1170
  %1180 = vrot.lane.b32.xlu0 %v1141, 16
  %v1181 = vpop.permute.xlu0 %1180
  %1182 = vrot.lane.b32.xlu0 %v1142, 16
  %v1183 = vpop.permute.xlu0 %1182
  %1184 = vrot.lane.b32.xlu0 %v1143, 16
  %v1185 = vpop.permute.xlu0 %1184
  %1186 = vrot.lane.b32.xlu0 %v1144, 16
  %v1187 = vpop.permute.xlu0 %1186
  %v1192 = vsel %vm104, %v1106, %v1165
  %v1193 = vsel %vm104, %v1107, %v1167
  %v1194 = vsel %vm104, %v1108, %v1169
  %v1195 = vsel %vm104, %v1109, %v1171
  %v1196 = vsel %vm563, %v1192, %v1181
  %v1197 = vsel %vm563, %v1193, %v1183
  %v1198 = vsel %vm563, %v1194, %v1185
  %v1199 = vsel %vm563, %v1195, %v1187
  %v1200 = vperm.slane %v1066, 0
  %v1202 = vsel %vm566, %v1196, 0
  %v1205 = vsel %vm566, %v1197, 0
  %v1208 = vsel %vm566, %v1198, 0
  %v1211 = vsel %vm566, %v1199, 0
  %1213 = vmatpush.msra.mxu0 0.0
  %1214 = vmatpush.msra.mxu0 0.0
  %1215 = vmatpush.msra.mxu0 0.0
  %1216 = vmatpush.msra.mxu0 0.0
  %1217 = vmatpush.msra.mxu0 0.0
  %1218 = vmatpush.msra.mxu0 0.0
  %1219 = vmatpush.msra.mxu0 0.0
  %1220 = vmatpush.msra.mxu0 0.0
  %1221 = vmatpush.msra.mxu0 0.0
  %1222 = vmatpush.msra.mxu0 0.0
  %1223 = vmatpush.msra.mxu0 0.0
  %1224 = vmatpush.msra.mxu0 0.0
  %1225 = vmatpush.msra.mxu0 0.0
  %1226 = vmatpush.msra.mxu0 %v1065
  %1227 = vmatpush.msra.mxu0 %v1064
  %1228 = vmatpush.msra.mxu0 %v1063
  %1229 = vmatmul.f32.gmra.mxu0 %v1202
  %v1230 = vpop.f32.mrf.mxu0
  %v1231 = vadd.f32 %v1200, %v1230
  %1232 = vmatmul.f32.gmra.mxu0 %v1205
  %v1233 = vpop.f32.mrf.mxu0
  %v1234 = vadd.f32 %v1200, %v1233
  %1235 = vmatmul.f32.gmra.mxu0 %v1208
  %v1236 = vpop.f32.mrf.mxu0
  %v1237 = vadd.f32 %v1200, %v1236
  %1238 = vmatmul.f32.gmra.mxu0 %v1211
  %v1239 = vpop.f32.mrf.mxu0
  %v1240 = vadd.f32 %v1200, %v1239
  %1241 = vdwg.mxu0
  %1242 = vst.msk [vmem:[%s3] sm:$0xff] %vm99, %v1231
  %1243 = vst.msk [vmem:[%s3 + $0x8] sm:$0xff] %vm99, %v1234
  %1244 = vst.msk [vmem:[%s3 + $0x10] sm:$0xff] %vm99, %v1237
  %1245 = vst.msk [vmem:[%s3 + $0x18] sm:$0xff] %vm99, %v1240
  %vm1246 = vcmask 1024
  %1247 = vst.msk [vmem:[%s4] sm:$0x3] %vm1246, %v846
  // Predicated region
  $region14: #{autoencoder_forward.1} parent=0 // pred_check
    _
  $region15: #{autoencoder_forward.1} parent=0 // pred_check_branch
    %1249 = sbr.rel (0) target = $region17
  $region16: #{autoencoder_forward.1} parent=0 // pred_region
    _
  $region17: #{autoencoder_forward.1} parent=0 // pred_fallthru
    _
  // Predicated region
  $region18: #{autoencoder_forward.1} parent=0 // pred_check
    _
  $region19: #{autoencoder_forward.1} parent=0 // pred_check_branch
    %1251 = sbr.rel (0) target = $region21
  $region20: #{autoencoder_forward.1} parent=0 // pred_region
    _
  $region21: #{autoencoder_forward.1} parent=0 // pred_fallthru
    _
  // Predicated region
  $region22: #{autoencoder_forward.1} parent=0 // pred_check
    _
  $region23: #{autoencoder_forward.1} parent=0 // pred_check_branch
    %1253 = sbr.rel (0) target = $region25
  $region24: #{autoencoder_forward.1} parent=0 // pred_region
    _
  $region25: #{autoencoder_forward.1} parent=0 // pred_fallthru
    _
  // Predicated region
  $region26: #{autoencoder_forward.1} parent=0 // pred_check
    _
  $region27: #{autoencoder_forward.1} parent=0 // pred_check_branch
    %1255 = sbr.rel (0) target = $region29
  $region28: #{autoencoder_forward.1} parent=0 // pred_region
    _
  $region29: #{autoencoder_forward.1} parent=0 // pred_fallthru
    _

</llo_original>
